<compile_context>
chip_gen: v6e
topology: v6e:2x2x1
jax: 0.10.0
libtpu: 0.0.40
codegen_flags: <defaults>
</compile_context>

<pallas_src>
import math

import jax
import jax.numpy as jnp
import numpy as np
from jax.experimental import pallas as pl
from jax.experimental.pallas import tpu as pltpu

# ----------------------------- small synthetic config -----------------------------
N_MELS = 16                   # preprocess_config.stft.n_mel_channels
REF_ENC_FILTERS = [8, 8, 16]  # model_config.reference_encoder.ref_enc_filters
REF_ENC_SIZE = 3              # ref_enc_size (kernel size, padding = 1)
REF_ENC_STRIDES = [2, 2]      # -> conv strides [1, 2, 2]; forward calls stride_lens twice
GRU_SIZE = 16                 # ref_enc_gru_size
E = 32                        # model_config.encoder.n_hidden
N_HEADS = 2                   # model_config.encoder.n_heads
BOTTLENECK = 8                # bottleneck_size_p
K_CONVS = len(REF_ENC_FILTERS)
CONV_STRIDES = [1] + list(REF_ENC_STRIDES)

HI = jax.lax.Precision.HIGHEST
F32 = jnp.float32


# =============================== Pallas kernels ====================================
# ---- fused ReferenceEncoder conv stack (mask + CoordConv + 3x[conv,lrelu,IN]) ------
def _conv_stack_kernel(strides):
    n_layers = len(strides)

    def kernel(*refs):
        mels_ref, coords_ref, keep0_ref, keep2_ref = refs[:4]
        layer_refs = refs[4:4 + 4 * n_layers]
        o_ref = refs[4 + 4 * n_layers]

        # masked_fill(mel_mask, 0) + CoordConv1d(with_r=True) coordinate channels
        x = mels_ref[...] * keep0_ref[...]                         # (T, n_mels)
        x = jnp.concatenate([x, coords_ref[...]], axis=1)          # (T, n_mels+2)

        for li in range(n_layers):
            w_ref, b_ref, g_ref, be_ref = layer_refs[4 * li:4 * li + 4]
            t_in, c_in = x.shape
            w = w_ref[...]                                         # (K*C_in, C_out)
            zrow = jnp.zeros((1, c_in), jnp.float32)
            xpad = jnp.concatenate([zrow, x, zrow], axis=0)        # padding = 1
            # stride-1 conv as K shifted-slice matmuls (in-kernel "im2col")
            y = jnp.dot(xpad[0:t_in, :], w[0:c_in, :],
                        preferred_element_type=jnp.float32)
            for k in range(1, REF_ENC_SIZE):
                y = y + jnp.dot(xpad[k:k + t_in, :], w[k * c_in:(k + 1) * c_in, :],
                                preferred_element_type=jnp.float32)
            y = y + b_ref[...]
            if strides[li] == 2:
                # exact stride-2 downsample via a 0/1 selection matmul (MXU, no
                # lane-strided slicing).  Cheap here; at production T prefer a
                # sublane-strided ref read.  # TODO(synk)
                t_out = (t_in - 1) // 2 + 1
                rr_i = jax.lax.broadcasted_iota(jnp.int32, (t_out, t_in), 1)
                cc_i = jax.lax.broadcasted_iota(jnp.int32, (t_out, t_in), 0)
                sel = jnp.where(rr_i == 2 * cc_i, 1.0, 0.0).astype(jnp.float32)
                y = jnp.dot(sel, y, preferred_element_type=jnp.float32)
            y = jnp.where(y >= 0.0, y, 0.3 * y)                    # F.leaky_relu(x, 0.3)
            mean = jnp.mean(y, axis=0, keepdims=True)              # InstanceNorm1d (affine)
            var = jnp.mean((y - mean) ** 2, axis=0, keepdims=True)
            x = (y - mean) * jax.lax.rsqrt(var + 1e-5) * g_ref[...] + be_ref[...]

        o_ref[...] = x * keep2_ref[...]                            # post-stride mel mask
    return kernel


def pallas_conv_stack(mels_t, coords, keep0, keep2, layer_params):
    """mels_t:[N,T,n_mels] time-major -> [N, Tc, C_last] time-major, masked."""
    N, T, C0 = mels_t.shape
    Tc = keep2.shape[1]
    C_last = layer_params[-1][0].shape[1]
    full2 = lambda n: (0, 0)
    in_specs = [
        pl.BlockSpec((None, T, C0), lambda n: (n, 0, 0)),
        pl.BlockSpec((T, 2), full2),
        pl.BlockSpec((None, T, 1), lambda n: (n, 0, 0)),
        pl.BlockSpec((None, Tc, 1), lambda n: (n, 0, 0)),
    ]
    flat_args = [mels_t, coords, keep0, keep2]
    for (w, b, g, be) in layer_params:
        in_specs += [pl.BlockSpec(w.shape, full2), pl.BlockSpec(b.shape, full2),
                     pl.BlockSpec(g.shape, full2), pl.BlockSpec(be.shape, full2)]
        flat_args += [w, b, g, be]
    return pl.pallas_call(
        _conv_stack_kernel(tuple(CONV_STRIDES)),
        out_shape=jax.ShapeDtypeStruct((N, Tc, C_last), F32),
        grid=(N,),
        in_specs=in_specs,
        out_specs=pl.BlockSpec((None, Tc, C_last), lambda n: (n, 0, 0)),
        compiler_params=pltpu.CompilerParams(dimension_semantics=("parallel",)),
    )(*flat_args)


# ---- fused GRU (hoisted gates, deferred projection) + pad mask + encoder_prj ------
def _gru_prj_kernel(x_ref, keep_ref, wih_ref, bih_ref, whh_ref, bhh_ref,
                    wp_ref, bp_ref, o_ref):
    Tc = x_ref.shape[0]
    H = whh_ref.shape[0]
    # input-gate projection hoisted out of the recurrence: ONE (Tc,C)x(C,3H) matmul
    gx = jnp.dot(x_ref[...], wih_ref[...], preferred_element_type=jnp.float32) + bih_ref[...]
    whh = whh_ref[...]
    bhh = bhh_ref[...]
    h = jnp.zeros((1, H), jnp.float32)
    hs = []
    # fully unrolled recurrence (Tc is small & static); only the (1,H)x(H,3H)
    # hidden-gate matmul + elementwise gates remain on the serial critical path.
    # TODO(synk): for large Tc switch to lax.fori_loop(unroll=k) with gx/h in VMEM scratch.
    for t in range(Tc):
        gxt = gx[t:t + 1, :]
        gh = jnp.dot(h, whh, preferred_element_type=jnp.float32) + bhh
        r = jax.nn.sigmoid(gxt[:, :H] + gh[:, :H])
        z = jax.nn.sigmoid(gxt[:, H:2 * H] + gh[:, H:2 * H])
        n = jnp.tanh(gxt[:, 2 * H:] + r * gh[:, 2 * H:])
        h = (1.0 - z) * n + z * h
        hs.append(h)
    h_all = jnp.concatenate(hs, axis=0)                            # (Tc, H)
    # pad_packed zeroing + encoder_prj deferred out of the loop: one matmul, one store
    o_ref[...] = (jnp.dot(h_all * keep_ref[...], wp_ref[...],
                          preferred_element_type=jnp.float32) + bp_ref[...])


def pallas_gru_prj(x, keep2, w_ih_t, b_ih, w_hh_t, b_hh, prj_w_t, prj_b):
    """x:[N,Tc,C] batch-first -> encoder_prj(GRU(x)) as [N, Tc, E]."""
    N, Tc, C = x.shape
    H = w_hh_t.shape[0]
    Eo = prj_w_t.shape[1]
    full2 = lambda n: (0, 0)
    return pl.pallas_call(
        _gru_prj_kernel,
        out_shape=jax.ShapeDtypeStruct((N, Tc, Eo), F32),
        grid=(N,),
        in_specs=[
            pl.BlockSpec((None, Tc, C), lambda n: (n, 0, 0)),
            pl.BlockSpec((None, Tc, 1), lambda n: (n, 0, 0)),
            pl.BlockSpec((C, 3 * H), full2),
            pl.BlockSpec((1, 3 * H), full2),
            pl.BlockSpec((H, 3 * H), full2),
            pl.BlockSpec((1, 3 * H), full2),
            pl.BlockSpec((H, Eo), full2),
            pl.BlockSpec((1, Eo), full2),
        ],
        out_specs=pl.BlockSpec((None, Tc, Eo), lambda n: (n, 0, 0)),
        compiler_params=pltpu.CompilerParams(dimension_semantics=("parallel",)),
    )(x, keep2, w_ih_t, b_ih, w_hh_t, b_hh, prj_w_t, prj_b)


# ---- fused Conformer relative MHSA + relative shift + bottleneck + src mask -------
def _rel_shift_rows(ps):
    """Exact Transformer-XL relative shift of one (Lq, Lr) score matrix.
    result[a, b] = padded_flat[Lq + a*Lr + b] with padded = [0 | ps]; each output row
    is a static window over (at most) two padded rows, so no in-kernel reshapes."""
    Lq, Lr = ps.shape
    padded = jnp.concatenate([jnp.zeros((Lq, 1), ps.dtype), ps], axis=1)  # (Lq, Lr+1)
    zero_row = jnp.zeros((1, Lr + 1), ps.dtype)
    rows = []
    for a in range(Lq):
        flat0 = Lq + a * Lr
        i0 = flat0 // (Lr + 1)
        off = flat0 % (Lr + 1)
        r0 = padded[i0:i0 + 1, :]
        r1 = padded[i0 + 1:i0 + 2, :] if (i0 + 1) < Lq else zero_row
        two = jnp.concatenate([r0, r1], axis=1)                    # (1, 2*(Lr+1))
        rows.append(two[:, off:off + Lr])
    return jnp.concatenate(rows, axis=0)                           # (Lq, Lr)


def _make_attention_kernel(n_heads, inv_scale):
    def kernel(x_ref, emb_ref, pos_ref, maskr_ref, keep_ref,
               wq_ref, bq_ref, wk_ref, wv_ref, wp_ref, u_ref, vb_ref,
               wo_ref, bo_ref, wb_ref, bb_ref, o_ref):
        Ed = x_ref.shape[-1]
        dh = Ed // n_heads
        q = jnp.dot(x_ref[...], wq_ref[...], preferred_element_type=jnp.float32) + bq_ref[...]
        k = jnp.dot(emb_ref[...], wk_ref[...], preferred_element_type=jnp.float32)
        v = jnp.dot(emb_ref[...], wv_ref[...], preferred_element_type=jnp.float32)
        p = jnp.dot(pos_ref[...], wp_ref[...], preferred_element_type=jnp.float32)
        qu = q + u_ref[...]
        qv = q + vb_ref[...]
        padded_mask = maskr_ref[...] > 0.5                         # (1, Lr), True = padded
        dn = (((1,), (1,)), ((), ()))                              # contract last dims
        ctx_parts = []
        for h in range(n_heads):                                   # heads = static lane slices
            sl = slice(h * dh, (h + 1) * dh)
            content = jax.lax.dot_general(qu[:, sl], k[:, sl], dn,
                                          preferred_element_type=jnp.float32)
            pos_score = jax.lax.dot_general(qv[:, sl], p[:, sl], dn,
                                            preferred_element_type=jnp.float32)
            s = (content + _rel_shift_rows(pos_score)) * inv_scale
            s = jnp.where(padded_mask, -1e9, s)                    # masked_fill(mask, -1e9)
            mx = jnp.max(s, axis=-1, keepdims=True)
            e = jnp.exp(s - mx)
            attn = e / jnp.sum(e, axis=-1, keepdims=True)
            ctx_parts.append(jnp.dot(attn, v[:, sl], preferred_element_type=jnp.float32))
        # concat heads -> ONE out_proj matmul on the full (Lq, E) context
        ctx = jnp.concatenate(ctx_parts, axis=1)
        ao = jnp.dot(ctx, wo_ref[...], preferred_element_type=jnp.float32) + bo_ref[...]
        out = jnp.dot(ao, wb_ref[...], preferred_element_type=jnp.float32) + bb_ref[...]
        o_ref[...] = out * keep_ref[...]                           # src_mask zeroing
    return kernel


def pallas_attention(x, emb, pos, maskr, keep_src, wq_t, bq, wk_t, wv_t, wp_t,
                     u_row, v_row, wo_t, bo, wbn_t, bbn, d_model, n_heads):
    N, Lq, Ed = x.shape
    Lr = emb.shape[1]
    BN = wbn_t.shape[1]
    full2 = lambda n: (0, 0)
    return pl.pallas_call(
        _make_attention_kernel(n_heads, 1.0 / math.sqrt(d_model)),
        out_shape=jax.ShapeDtypeStruct((N, Lq, BN), F32),
        grid=(N,),
        in_specs=[
            pl.BlockSpec((None, Lq, Ed), lambda n: (n, 0, 0)),
            pl.BlockSpec((None, Lr, Ed), lambda n: (n, 0, 0)),
            pl.BlockSpec((Lr, Ed), full2),
            pl.BlockSpec((None, 1, Lr), lambda n: (n, 0, 0)),
            pl.BlockSpec((None, Lq, 1), lambda n: (n, 0, 0)),
            pl.BlockSpec((Ed, Ed), full2),
            pl.BlockSpec((1, Ed), full2),
            pl.BlockSpec((Ed, Ed), full2),
            pl.BlockSpec((Ed, Ed), full2),
            pl.BlockSpec((Ed, Ed), full2),
            pl.BlockSpec((1, Ed), full2),
            pl.BlockSpec((1, Ed), full2),
            pl.BlockSpec((Ed, Ed), full2),
            pl.BlockSpec((1, Ed), full2),
            pl.BlockSpec((Ed, BN), full2),
            pl.BlockSpec((1, BN), full2),
        ],
        out_specs=pl.BlockSpec((None, Lq, BN), lambda n: (n, 0, 0)),
        compiler_params=pltpu.CompilerParams(dimension_semantics=("parallel",)),
    )(x, emb, pos, maskr, keep_src, wq_t, bq, wk_t, wv_t, wp_t,
      u_row, v_row, wo_t, bo, wbn_t, bbn)


# =========================== pure-JAX reference ops (for checking) ================
def ref_conv_stack(mels_t, coords, keep0, keep2, layer_params):
    x = mels_t * keep0
    N = x.shape[0]
    x = jnp.concatenate([x, jnp.broadcast_to(coords[None], (N,) + coords.shape)], axis=-1)
    for (w, b, g, be), stride in zip(layer_params, CONV_STRIDES):
        kc, c_out = w.shape
        c_in = kc // REF_ENC_SIZE
        t_in = x.shape[1]
        xpad = jnp.pad(x, ((0, 0), (1, 1), (0, 0)))
        y = sum(jnp.einsum("ntc,co->nto", xpad[:, k:k + t_in, :],
                           w[k * c_in:(k + 1) * c_in, :], precision=HI)
                for k in range(REF_ENC_SIZE)) + b[None]
        if stride == 2:
            y = y[:, ::2, :]
        y = jnp.where(y >= 0.0, y, 0.3 * y)
        mean = jnp.mean(y, axis=1, keepdims=True)
        var = jnp.mean((y - mean) ** 2, axis=1, keepdims=True)
        x = (y - mean) * jax.lax.rsqrt(var + 1e-5) * g[None] + be[None]
    return x * keep2


def ref_gru_prj(x, keep2, w_ih_t, b_ih, w_hh_t, b_hh, prj_w_t, prj_b):
    N, Tc, C = x.shape
    H = w_hh_t.shape[0]
    gx_all = jnp.einsum("ntc,cg->ntg", x, w_ih_t, precision=HI) + b_ih[None]

    def step(h, gx):
        gh = jnp.dot(h, w_hh_t, precision=HI) + b_hh
        r = jax.nn.sigmoid(gx[:, :H] + gh[:, :H])
        z = jax.nn.sigmoid(gx[:, H:2 * H] + gh[:, H:2 * H])
        n = jnp.tanh(gx[:, 2 * H:] + r * gh[:, 2 * H:])
        h_new = (1.0 - z) * n + z * h
        return h_new, h_new

    h0 = jnp.zeros((N, H), F32)
    _, hs = jax.lax.scan(step, h0, gx_all.transpose(1, 0, 2))
    hs = hs.transpose(1, 0, 2)                                     # (N, Tc, H)
    return jnp.einsum("nth,he->nte", hs * keep2, prj_w_t, precision=HI) + prj_b[None]


def _relative_shift_ref(pos_score):
    b, h, L1, L2 = pos_score.shape
    zeros = jnp.zeros((b, h, L1, 1), pos_score.dtype)
    padded = jnp.concatenate([zeros, pos_score], axis=-1)
    padded = padded.reshape(b, h, L2 + 1, L1)
    return padded[:, :, 1:].reshape(b, h, L1, L2)


def ref_attention(x, emb, pos, maskr, keep_src, wq_t, bq, wk_t, wv_t, wp_t,
                  u_row, v_row, wo_t, bo, wbn_t, bbn, d_model, n_heads):
    N, Lq, Ed = x.shape
    Lr = emb.shape[1]
    dh = Ed // n_heads
    q = jnp.einsum("nqe,ef->nqf", x, wq_t, precision=HI) + bq[None]
    k = jnp.einsum("nre,ef->nrf", emb, wk_t, precision=HI)
    v = jnp.einsum("nre,ef->nrf", emb, wv_t, precision=HI)
    p = jnp.dot(pos, wp_t, precision=HI)
    qu = q + u_row[None]
    qv = q + v_row[None]
    split = lambda t: t.reshape(N, -1, n_heads, dh).transpose(0, 2, 1, 3)
    q4u, q4v, k4, v4 = split(qu), split(qv), split(k), split(v)
    p4 = p.reshape(Lr, n_heads, dh).transpose(1, 0, 2)
    content = jnp.einsum("nhqd,nhkd->nhqk", q4u, k4, precision=HI)
    pos_score = jnp.einsum("nhqd,hkd->nhqk", q4v, p4, precision=HI)
    s = (content + _relative_shift_ref(pos_score)) / math.sqrt(d_model)
    s = jnp.where(maskr[:, :, None, :] > 0.5, -1e9, s)
    attn = jax.nn.softmax(s, axis=-1)
    ctx = jnp.einsum("nhqk,nhkd->nhqd", attn, v4, precision=HI)
    ctx = ctx.transpose(0, 2, 1, 3).reshape(N, Lq, Ed)
    ao = jnp.einsum("nqe,ef->nqf", ctx, wo_t, precision=HI) + bo[None]
    out = jnp.einsum("nqe,eb->nqb", ao, wbn_t, precision=HI) + bbn[None]
    return out * keep_src


PALLAS_OPS = dict(conv_stack=pallas_conv_stack, gru_prj=pallas_gru_prj,
                  attention=pallas_attention)
REF_OPS = dict(conv_stack=ref_conv_stack, gru_prj=ref_gru_prj,
               attention=ref_attention)


# ================================ shared glue ======================================
def forward(params, x, src_mask, mels, mel_lens, encoding, ops):
    """PhonemeLevelProsodyEncoder.forward.
    x: [N, Lq, E]; src_mask: bool [N, Lq]; mels: [N, n_mels, T]; mel_lens: int [N];
    encoding: [1, max_len, E]. Returns [N, Lq, bottleneck_size]."""
    conv_stack, gru_prj, attention = ops["conv_stack"], ops["gru_prj"], ops["attention"]
    N, n_mels, T = mels.shape
    mels_t = mels.astype(F32).transpose(0, 2, 1)                          # [N, T, n_mels]
    keep0 = (jnp.arange(T)[None, :] < mel_lens[:, None]).astype(F32)[:, :, None]

    # CoordConv1d (rank=1, with_r=True) coordinate channels (unmasked, as in the module)
    # TODO(synk): verify the rr centering convention against voice_smith's CoordConv1d.
    xx = (jnp.arange(T, dtype=F32) / (T - 1)) * 2.0 - 1.0
    rr = jnp.sqrt((xx - 0.5) ** 2)
    coords = jnp.stack([xx, rr], axis=1)                                  # [T, 2]

    # conv output length and tools.stride_lens applied twice
    Tc = T
    for s in CONV_STRIDES:
        Tc = (Tc + 2 * (REF_ENC_SIZE // 2) - REF_ENC_SIZE) // s + 1
    lens = mel_lens
    for _ in range(2):
        lens = jnp.ceil(lens / 2.0).astype(jnp.int32)
    keep2 = (jnp.arange(Tc)[None, :] < lens[:, None]).astype(F32)[:, :, None]   # [N, Tc, 1]

    layer_params = []
    for i in range(K_CONVS):
        w = params["conv_w"][i]                                           # [C_out, C_in, K]
        c_out, c_in, kk = w.shape
        w_t = w.transpose(2, 1, 0).reshape(kk * c_in, c_out).astype(F32)  # rows = (k, c_in)
        layer_params.append((w_t,
                             params["conv_b"][i].reshape(1, c_out).astype(F32),
                             params["in_gamma"][i].reshape(1, c_out).astype(F32),
                             params["in_beta"][i].reshape(1, c_out).astype(F32)))

    h = conv_stack(mels_t, coords, keep0, keep2, layer_params)            # [N, Tc, C_last]

    emb = gru_prj(h, keep2,
                  params["gru_w_ih"].T.astype(F32),
                  params["gru_b_ih"].reshape(1, -1).astype(F32),
                  params["gru_w_hh"].T.astype(F32),
                  params["gru_b_hh"].reshape(1, -1).astype(F32),
                  params["prj_w"].T.astype(F32),
                  params["prj_b"].reshape(1, -1).astype(F32))             # [N, Tc, E]

    Lr = Tc
    pos = encoding[0, :Lr, :].astype(F32)
    maskr = (jnp.arange(Lr)[None, :] >= lens[:, None]).astype(F32)[:, None, :]  # 1 = padded
    keep_src = (~src_mask).astype(F32)[:, :, None]                        # [N, Lq, 1]
    out = attention(x.astype(F32), emb, pos, maskr, keep_src,
                    params["q_w"].T.astype(F32), params["q_b"].reshape(1, -1).astype(F32),
                    params["k_w"].T.astype(F32), params["v_w"].T.astype(F32),
                    params["pos_w"].T.astype(F32),
                    params["u_bias"].reshape(1, -1).astype(F32),
                    params["v_bias"].reshape(1, -1).astype(F32),
                    params["out_w"].T.astype(F32), params["out_b"].reshape(1, -1).astype(F32),
                    params["bn_w"].T.astype(F32), params["bn_b"].reshape(1, -1).astype(F32),
                    E, N_HEADS)
    return out


# ================================ parameters ======================================
def init_params(key):
    keys = iter(jax.random.split(key, 40))

    def nrm(shape, scale=0.1):
        return scale * jax.random.normal(next(keys), shape, dtype=F32)

    filters = [N_MELS] + REF_ENC_FILTERS
    conv_in = [filters[0] + 2] + filters[1:-1]        # CoordConv adds 2 channels
    p = {
        "conv_w": [nrm((filters[i + 1], conv_in[i], REF_ENC_SIZE)) for i in range(K_CONVS)],
        "conv_b": [nrm((filters[i + 1],)) for i in range(K_CONVS)],
        "in_gamma": [1.0 + nrm((REF_ENC_FILTERS[i],)) for i in range(K_CONVS)],
        "in_beta": [nrm((REF_ENC_FILTERS[i],)) for i in range(K_CONVS)],
        "gru_w_ih": nrm((3 * GRU_SIZE, REF_ENC_FILTERS[-1])),
        "gru_w_hh": nrm((3 * GRU_SIZE, GRU_SIZE)),
        "gru_b_ih": nrm((3 * GRU_SIZE,)),
        "gru_b_hh": nrm((3 * GRU_SIZE,)),
        "prj_w": nrm((E, GRU_SIZE)), "prj_b": nrm((E,)),
        "q_w": nrm((E, E)), "q_b": nrm((E,)),
        "k_w": nrm((E, E)), "v_w": nrm((E, E)), "pos_w": nrm((E, E)),
        "u_bias": nrm((N_HEADS, E // N_HEADS)), "v_bias": nrm((N_HEADS, E // N_HEADS)),
        "out_w": nrm((E, E)), "out_b": nrm((E,)),
        "bn_w": nrm((BOTTLENECK, E)), "bn_b": nrm((BOTTLENECK,)),
    }
    return p


# ==================================== main =========================================
if __name__ == "__main__":
    key = jax.random.PRNGKey(0)
    kp, kx, km, ke = jax.random.split(key, 4)
    params = init_params(kp)

    N, T, Lq = 2, 32, 8
    x = 0.5 * jax.random.normal(kx, (N, Lq, E), dtype=F32)
    mels = 0.5 * jax.random.normal(km, (N, N_MELS, T), dtype=F32)
    encoding = 0.5 * jax.random.normal(ke, (1, T, E), dtype=F32)
    mel_lens = jnp.array([32, 25], dtype=jnp.int32)           # max == T
    src_lens = jnp.array([8, 6], dtype=jnp.int32)
    src_mask = jnp.arange(Lq)[None, :] >= src_lens[:, None]   # True = padded

    out = jax.block_until_ready(
        forward(params, x, src_mask, mels, mel_lens, encoding, PALLAS_OPS))
    ref = jax.block_until_ready(
        forward(params, x, src_mask, mels, mel_lens, encoding, REF_OPS))

    assert out.shape == (N, Lq, BOTTLENECK)
    np.testing.assert_allclose(np.asarray(out), np.asarray(ref), rtol=5e-2, atol=5e-2)
    print("KERNEL_OK")
</pallas_src>

<mosaic_0001>
module attributes {stable_mosaic.version = 11 : i64} {
  func.func @kernel(%arg0: i32, %arg1: memref<1x32x16xf32, #tpu.memory_space<vmem>>, %arg2: memref<32x2xf32, #tpu.memory_space<vmem>>, %arg3: memref<1x32x1xf32, #tpu.memory_space<vmem>>, %arg4: memref<1x8x1xf32, #tpu.memory_space<vmem>>, %arg5: memref<54x8xf32, #tpu.memory_space<vmem>>, %arg6: memref<1x8xf32, #tpu.memory_space<vmem>>, %arg7: memref<1x8xf32, #tpu.memory_space<vmem>>, %arg8: memref<1x8xf32, #tpu.memory_space<vmem>>, %arg9: memref<24x8xf32, #tpu.memory_space<vmem>>, %arg10: memref<1x8xf32, #tpu.memory_space<vmem>>, %arg11: memref<1x8xf32, #tpu.memory_space<vmem>>, %arg12: memref<1x8xf32, #tpu.memory_space<vmem>>, %arg13: memref<24x16xf32, #tpu.memory_space<vmem>>, %arg14: memref<1x16xf32, #tpu.memory_space<vmem>>, %arg15: memref<1x16xf32, #tpu.memory_space<vmem>>, %arg16: memref<1x16xf32, #tpu.memory_space<vmem>>, %arg17: memref<1x8x16xf32, #tpu.memory_space<vmem>>) attributes {dimension_semantics = [#tpu.dimension_semantics<parallel>], iteration_bounds = array<i64: 2>, scalar_prefetch = 0 : i64, scratch_operands = 0 : i64, tpu.core_type = #tpu.core_type<tc>, window_params = [{transform_indices = @transform_0, window_bounds = array<i64: 1, 32, 16>}, {pipeline_mode = #tpu.pipeline_mode<synchronous>, transform_indices = @transform_1, window_bounds = array<i64: 32, 2>}, {transform_indices = @transform_2, window_bounds = array<i64: 1, 32, 1>}, {transform_indices = @transform_3, window_bounds = array<i64: 1, 8, 1>}, {pipeline_mode = #tpu.pipeline_mode<synchronous>, transform_indices = @transform_4, window_bounds = array<i64: 54, 8>}, {pipeline_mode = #tpu.pipeline_mode<synchronous>, transform_indices = @transform_5, window_bounds = array<i64: 1, 8>}, {pipeline_mode = #tpu.pipeline_mode<synchronous>, transform_indices = @transform_6, window_bounds = array<i64: 1, 8>}, {pipeline_mode = #tpu.pipeline_mode<synchronous>, transform_indices = @transform_7, window_bounds = array<i64: 1, 8>}, {pipeline_mode = #tpu.pipeline_mode<synchronous>, transform_indices = @transform_8, window_bounds = array<i64: 24, 8>}, {pipeline_mode = #tpu.pipeline_mode<synchronous>, transform_indices = @transform_9, window_bounds = array<i64: 1, 8>}, {pipeline_mode = #tpu.pipeline_mode<synchronous>, transform_indices = @transform_10, window_bounds = array<i64: 1, 8>}, {pipeline_mode = #tpu.pipeline_mode<synchronous>, transform_indices = @transform_11, window_bounds = array<i64: 1, 8>}, {pipeline_mode = #tpu.pipeline_mode<synchronous>, transform_indices = @transform_12, window_bounds = array<i64: 24, 16>}, {pipeline_mode = #tpu.pipeline_mode<synchronous>, transform_indices = @transform_13, window_bounds = array<i64: 1, 16>}, {pipeline_mode = #tpu.pipeline_mode<synchronous>, transform_indices = @transform_14, window_bounds = array<i64: 1, 16>}, {pipeline_mode = #tpu.pipeline_mode<synchronous>, transform_indices = @transform_15, window_bounds = array<i64: 1, 16>}, {transform_indices = @transform_16, window_bounds = array<i64: 1, 8, 16>}]} {
    %c0 = arith.constant 0 : index
    %c0_0 = arith.constant 0 : index
    %c0_1 = arith.constant 0 : index
    %0 = vector.load %arg1[%c0, %c0_0, %c0_1] : memref<1x32x16xf32, #tpu.memory_space<vmem>>, vector<1x32x16xf32>
    %1 = vector.shape_cast %0 : vector<1x32x16xf32> to vector<32x16xf32>
    %c0_2 = arith.constant 0 : index
    %c0_3 = arith.constant 0 : index
    %c0_4 = arith.constant 0 : index
    %2 = vector.load %arg3[%c0_2, %c0_3, %c0_4] : memref<1x32x1xf32, #tpu.memory_space<vmem>>, vector<1x32x1xf32>
    %3 = vector.shape_cast %2 : vector<1x32x1xf32> to vector<32x1xf32>
    %4 = vector.broadcast %3 : vector<32x1xf32> to vector<32x16xf32>
    %5 = arith.mulf %1, %4 : vector<32x16xf32>
    %c0_5 = arith.constant 0 : index
    %c0_6 = arith.constant 0 : index
    %6 = vector.load %arg2[%c0_5, %c0_6] : memref<32x2xf32, #tpu.memory_space<vmem>>, vector<32x2xf32>
    %7 = tpu.concatenate %5, %6 in 1 : vector<32x16xf32>, vector<32x2xf32> -> vector<32x18xf32>
    %c0_7 = arith.constant 0 : index
    %c0_8 = arith.constant 0 : index
    %8 = vector.load %arg5[%c0_7, %c0_8] : memref<54x8xf32, #tpu.memory_space<vmem>>, vector<54x8xf32>
    %cst = arith.constant 0.000000e+00 : f32
    %9 = vector.broadcast %cst : f32 to vector<1x18xf32>
    %10 = tpu.concatenate %9, %7, %9 in 0 : vector<1x18xf32>, vector<32x18xf32>, vector<1x18xf32> -> vector<34x18xf32>
    %11 = vector.extract_strided_slice %10 {offsets = [0, 0], sizes = [32, 18], strides = [1, 1]} : vector<34x18xf32> to vector<32x18xf32>
    %12 = vector.extract_strided_slice %8 {offsets = [0, 0], sizes = [18, 8], strides = [1, 1]} : vector<54x8xf32> to vector<18x8xf32>
    %cst_9 = arith.constant dense<0.000000e+00> : vector<32x8xf32>
    %13 = tpu.matmul %11, %12, %cst_9 {dimension_numbers = #tpu.dot_dimension_numbers<[1], [0], [0], [1], [0, 0, 1, 1], [], []>} : vector<32x18xf32>, vector<18x8xf32>, vector<32x8xf32> -> vector<32x8xf32>
    %14 = vector.extract_strided_slice %10 {offsets = [1, 0], sizes = [32, 18], strides = [1, 1]} : vector<34x18xf32> to vector<32x18xf32>
    %15 = vector.extract_strided_slice %8 {offsets = [18, 0], sizes = [18, 8], strides = [1, 1]} : vector<54x8xf32> to vector<18x8xf32>
    %cst_10 = arith.constant dense<0.000000e+00> : vector<32x8xf32>
    %16 = tpu.matmul %14, %15, %cst_10 {dimension_numbers = #tpu.dot_dimension_numbers<[1], [0], [0], [1], [0, 0, 1, 1], [], []>} : vector<32x18xf32>, vector<18x8xf32>, vector<32x8xf32> -> vector<32x8xf32>
    %17 = arith.addf %13, %16 : vector<32x8xf32>
    %18 = vector.extract_strided_slice %10 {offsets = [2, 0], sizes = [32, 18], strides = [1, 1]} : vector<34x18xf32> to vector<32x18xf32>
    %19 = vector.extract_strided_slice %8 {offsets = [36, 0], sizes = [18, 8], strides = [1, 1]} : vector<54x8xf32> to vector<18x8xf32>
    %cst_11 = arith.constant dense<0.000000e+00> : vector<32x8xf32>
    %20 = tpu.matmul %18, %19, %cst_11 {dimension_numbers = #tpu.dot_dimension_numbers<[1], [0], [0], [1], [0, 0, 1, 1], [], []>} : vector<32x18xf32>, vector<18x8xf32>, vector<32x8xf32> -> vector<32x8xf32>
    %21 = arith.addf %17, %20 : vector<32x8xf32>
    %c0_12 = arith.constant 0 : index
    %c0_13 = arith.constant 0 : index
    %22 = vector.load %arg6[%c0_12, %c0_13] : memref<1x8xf32, #tpu.memory_space<vmem>>, vector<1x8xf32>
    %23 = vector.broadcast %22 : vector<1x8xf32> to vector<32x8xf32>
    %24 = arith.addf %21, %23 : vector<32x8xf32>
    %cst_14 = arith.constant 0.000000e+00 : f32
    %25 = vector.broadcast %cst_14 : f32 to vector<32x8xf32>
    %26 = arith.cmpf oge, %24, %25 : vector<32x8xf32>
    %cst_15 = arith.constant 3.000000e-01 : f32
    %27 = vector.broadcast %cst_15 : f32 to vector<32x8xf32>
    %28 = arith.mulf %27, %24 : vector<32x8xf32>
    %29 = arith.select %26, %24, %28 : vector<32x8xi1>, vector<32x8xf32>
    %cst_16 = arith.constant dense<0.000000e+00> : vector<8xf32>
    %30 = vector.multi_reduction <add>, %29, %cst_16 [0] : vector<32x8xf32> to vector<8xf32>
    %31 = vector.shape_cast %30 : vector<8xf32> to vector<1x8xf32>
    %cst_17 = arith.constant 3.200000e+01 : f32
    %32 = vector.broadcast %cst_17 : f32 to vector<1x8xf32>
    %33 = arith.divf %31, %32 : vector<1x8xf32>
    %34 = vector.broadcast %33 : vector<1x8xf32> to vector<32x8xf32>
    %35 = arith.subf %29, %34 : vector<32x8xf32>
    %36 = arith.mulf %35, %35 : vector<32x8xf32>
    %cst_18 = arith.constant dense<0.000000e+00> : vector<8xf32>
    %37 = vector.multi_reduction <add>, %36, %cst_18 [0] : vector<32x8xf32> to vector<8xf32>
    %38 = vector.shape_cast %37 : vector<8xf32> to vector<1x8xf32>
    %cst_19 = arith.constant 3.200000e+01 : f32
    %39 = vector.broadcast %cst_19 : f32 to vector<1x8xf32>
    %40 = arith.divf %38, %39 : vector<1x8xf32>
    %41 = vector.broadcast %33 : vector<1x8xf32> to vector<32x8xf32>
    %42 = arith.subf %29, %41 : vector<32x8xf32>
    %cst_20 = arith.constant 9.99999974E-6 : f32
    %43 = vector.broadcast %cst_20 : f32 to vector<1x8xf32>
    %44 = arith.addf %40, %43 : vector<1x8xf32>
    %45 = math.rsqrt %44 : vector<1x8xf32>
    %46 = vector.broadcast %45 : vector<1x8xf32> to vector<32x8xf32>
    %47 = arith.mulf %42, %46 : vector<32x8xf32>
    %c0_21 = arith.constant 0 : index
    %c0_22 = arith.constant 0 : index
    %48 = vector.load %arg7[%c0_21, %c0_22] : memref<1x8xf32, #tpu.memory_space<vmem>>, vector<1x8xf32>
    %49 = vector.broadcast %48 : vector<1x8xf32> to vector<32x8xf32>
    %50 = arith.mulf %47, %49 : vector<32x8xf32>
    %c0_23 = arith.constant 0 : index
    %c0_24 = arith.constant 0 : index
    %51 = vector.load %arg8[%c0_23, %c0_24] : memref<1x8xf32, #tpu.memory_space<vmem>>, vector<1x8xf32>
    %52 = vector.broadcast %51 : vector<1x8xf32> to vector<32x8xf32>
    %53 = arith.addf %50, %52 : vector<32x8xf32>
    %c0_25 = arith.constant 0 : index
    %c0_26 = arith.constant 0 : index
    %54 = vector.load %arg9[%c0_25, %c0_26] : memref<24x8xf32, #tpu.memory_space<vmem>>, vector<24x8xf32>
    %cst_27 = arith.constant 0.000000e+00 : f32
    %55 = vector.broadcast %cst_27 : f32 to vector<1x8xf32>
    %56 = tpu.concatenate %55, %53, %55 in 0 : vector<1x8xf32>, vector<32x8xf32>, vector<1x8xf32> -> vector<34x8xf32>
    %57 = vector.extract_strided_slice %56 {offsets = [0, 0], sizes = [32, 8], strides = [1, 1]} : vector<34x8xf32> to vector<32x8xf32>
    %58 = vector.extract_strided_slice %54 {offsets = [0, 0], sizes = [8, 8], strides = [1, 1]} : vector<24x8xf32> to vector<8x8xf32>
    %cst_28 = arith.constant dense<0.000000e+00> : vector<32x8xf32>
    %59 = tpu.matmul %57, %58, %cst_28 {dimension_numbers = #tpu.dot_dimension_numbers<[1], [0], [0], [1], [0, 0, 1, 1], [], []>} : vector<32x8xf32>, vector<8x8xf32>, vector<32x8xf32> -> vector<32x8xf32>
    %60 = vector.extract_strided_slice %56 {offsets = [1, 0], sizes = [32, 8], strides = [1, 1]} : vector<34x8xf32> to vector<32x8xf32>
    %61 = vector.extract_strided_slice %54 {offsets = [8, 0], sizes = [8, 8], strides = [1, 1]} : vector<24x8xf32> to vector<8x8xf32>
    %cst_29 = arith.constant dense<0.000000e+00> : vector<32x8xf32>
    %62 = tpu.matmul %60, %61, %cst_29 {dimension_numbers = #tpu.dot_dimension_numbers<[1], [0], [0], [1], [0, 0, 1, 1], [], []>} : vector<32x8xf32>, vector<8x8xf32>, vector<32x8xf32> -> vector<32x8xf32>
    %63 = arith.addf %59, %62 : vector<32x8xf32>
    %64 = vector.extract_strided_slice %56 {offsets = [2, 0], sizes = [32, 8], strides = [1, 1]} : vector<34x8xf32> to vector<32x8xf32>
    %65 = vector.extract_strided_slice %54 {offsets = [16, 0], sizes = [8, 8], strides = [1, 1]} : vector<24x8xf32> to vector<8x8xf32>
    %cst_30 = arith.constant dense<0.000000e+00> : vector<32x8xf32>
    %66 = tpu.matmul %64, %65, %cst_30 {dimension_numbers = #tpu.dot_dimension_numbers<[1], [0], [0], [1], [0, 0, 1, 1], [], []>} : vector<32x8xf32>, vector<8x8xf32>, vector<32x8xf32> -> vector<32x8xf32>
    %67 = arith.addf %63, %66 : vector<32x8xf32>
    %c0_31 = arith.constant 0 : index
    %c0_32 = arith.constant 0 : index
    %68 = vector.load %arg10[%c0_31, %c0_32] : memref<1x8xf32, #tpu.memory_space<vmem>>, vector<1x8xf32>
    %69 = vector.broadcast %68 : vector<1x8xf32> to vector<32x8xf32>
    %70 = arith.addf %67, %69 : vector<32x8xf32>
    %71 = tpu.iota {dimensions = array<i32: 1>} : vector<16x32xi32>
    %72 = tpu.iota {dimensions = array<i32: 0>} : vector<16x32xi32>
    %c2_i32 = arith.constant 2 : i32
    %73 = vector.broadcast %c2_i32 : i32 to vector<16x32xi32>
    %74 = arith.muli %73, %72 : vector<16x32xi32>
    %75 = arith.cmpi eq, %71, %74 : vector<16x32xi32>
    %cst_33 = arith.constant 1.000000e+00 : f32
    %cst_34 = arith.constant 0.000000e+00 : f32
    %76 = vector.broadcast %cst_33 : f32 to vector<16x32xf32>
    %77 = vector.broadcast %cst_34 : f32 to vector<16x32xf32>
    %78 = arith.select %75, %76, %77 : vector<16x32xi1>, vector<16x32xf32>
    %cst_35 = arith.constant dense<0.000000e+00> : vector<16x8xf32>
    %79 = tpu.matmul %78, %70, %cst_35 {dimension_numbers = #tpu.dot_dimension_numbers<[1], [0], [0], [1], [0, 0, 1, 1], [], []>} : vector<16x32xf32>, vector<32x8xf32>, vector<16x8xf32> -> vector<16x8xf32>
    %cst_36 = arith.constant 0.000000e+00 : f32
    %80 = vector.broadcast %cst_36 : f32 to vector<16x8xf32>
    %81 = arith.cmpf oge, %79, %80 : vector<16x8xf32>
    %cst_37 = arith.constant 3.000000e-01 : f32
    %82 = vector.broadcast %cst_37 : f32 to vector<16x8xf32>
    %83 = arith.mulf %82, %79 : vector<16x8xf32>
    %84 = arith.select %81, %79, %83 : vector<16x8xi1>, vector<16x8xf32>
    %cst_38 = arith.constant dense<0.000000e+00> : vector<8xf32>
    %85 = vector.multi_reduction <add>, %84, %cst_38 [0] : vector<16x8xf32> to vector<8xf32>
    %86 = vector.shape_cast %85 : vector<8xf32> to vector<1x8xf32>
    %cst_39 = arith.constant 1.600000e+01 : f32
    %87 = vector.broadcast %cst_39 : f32 to vector<1x8xf32>
    %88 = arith.divf %86, %87 : vector<1x8xf32>
    %89 = vector.broadcast %88 : vector<1x8xf32> to vector<16x8xf32>
    %90 = arith.subf %84, %89 : vector<16x8xf32>
    %91 = arith.mulf %90, %90 : vector<16x8xf32>
    %cst_40 = arith.constant dense<0.000000e+00> : vector<8xf32>
    %92 = vector.multi_reduction <add>, %91, %cst_40 [0] : vector<16x8xf32> to vector<8xf32>
    %93 = vector.shape_cast %92 : vector<8xf32> to vector<1x8xf32>
    %cst_41 = arith.constant 1.600000e+01 : f32
    %94 = vector.broadcast %cst_41 : f32 to vector<1x8xf32>
    %95 = arith.divf %93, %94 : vector<1x8xf32>
    %96 = vector.broadcast %88 : vector<1x8xf32> to vector<16x8xf32>
    %97 = arith.subf %84, %96 : vector<16x8xf32>
    %cst_42 = arith.constant 9.99999974E-6 : f32
    %98 = vector.broadcast %cst_42 : f32 to vector<1x8xf32>
    %99 = arith.addf %95, %98 : vector<1x8xf32>
    %100 = math.rsqrt %99 : vector<1x8xf32>
    %101 = vector.broadcast %100 : vector<1x8xf32> to vector<16x8xf32>
    %102 = arith.mulf %97, %101 : vector<16x8xf32>
    %c0_43 = arith.constant 0 : index
    %c0_44 = arith.constant 0 : index
    %103 = vector.load %arg11[%c0_43, %c0_44] : memref<1x8xf32, #tpu.memory_space<vmem>>, vector<1x8xf32>
    %104 = vector.broadcast %103 : vector<1x8xf32> to vector<16x8xf32>
    %105 = arith.mulf %102, %104 : vector<16x8xf32>
    %c0_45 = arith.constant 0 : index
    %c0_46 = arith.constant 0 : index
    %106 = vector.load %arg12[%c0_45, %c0_46] : memref<1x8xf32, #tpu.memory_space<vmem>>, vector<1x8xf32>
    %107 = vector.broadcast %106 : vector<1x8xf32> to vector<16x8xf32>
    %108 = arith.addf %105, %107 : vector<16x8xf32>
    %c0_47 = arith.constant 0 : index
    %c0_48 = arith.constant 0 : index
    %109 = vector.load %arg13[%c0_47, %c0_48] : memref<24x16xf32, #tpu.memory_space<vmem>>, vector<24x16xf32>
    %cst_49 = arith.constant 0.000000e+00 : f32
    %110 = vector.broadcast %cst_49 : f32 to vector<1x8xf32>
    %111 = tpu.concatenate %110, %108, %110 in 0 : vector<1x8xf32>, vector<16x8xf32>, vector<1x8xf32> -> vector<18x8xf32>
    %112 = vector.extract_strided_slice %111 {offsets = [0, 0], sizes = [16, 8], strides = [1, 1]} : vector<18x8xf32> to vector<16x8xf32>
    %113 = vector.extract_strided_slice %109 {offsets = [0, 0], sizes = [8, 16], strides = [1, 1]} : vector<24x16xf32> to vector<8x16xf32>
    %cst_50 = arith.constant dense<0.000000e+00> : vector<16x16xf32>
    %114 = tpu.matmul %112, %113, %cst_50 {dimension_numbers = #tpu.dot_dimension_numbers<[1], [0], [0], [1], [0, 0, 1, 1], [], []>} : vector<16x8xf32>, vector<8x16xf32>, vector<16x16xf32> -> vector<16x16xf32>
    %115 = vector.extract_strided_slice %111 {offsets = [1, 0], sizes = [16, 8], strides = [1, 1]} : vector<18x8xf32> to vector<16x8xf32>
    %116 = vector.extract_strided_slice %109 {offsets = [8, 0], sizes = [8, 16], strides = [1, 1]} : vector<24x16xf32> to vector<8x16xf32>
    %cst_51 = arith.constant dense<0.000000e+00> : vector<16x16xf32>
    %117 = tpu.matmul %115, %116, %cst_51 {dimension_numbers = #tpu.dot_dimension_numbers<[1], [0], [0], [1], [0, 0, 1, 1], [], []>} : vector<16x8xf32>, vector<8x16xf32>, vector<16x16xf32> -> vector<16x16xf32>
    %118 = arith.addf %114, %117 : vector<16x16xf32>
    %119 = vector.extract_strided_slice %111 {offsets = [2, 0], sizes = [16, 8], strides = [1, 1]} : vector<18x8xf32> to vector<16x8xf32>
    %120 = vector.extract_strided_slice %109 {offsets = [16, 0], sizes = [8, 16], strides = [1, 1]} : vector<24x16xf32> to vector<8x16xf32>
    %cst_52 = arith.constant dense<0.000000e+00> : vector<16x16xf32>
    %121 = tpu.matmul %119, %120, %cst_52 {dimension_numbers = #tpu.dot_dimension_numbers<[1], [0], [0], [1], [0, 0, 1, 1], [], []>} : vector<16x8xf32>, vector<8x16xf32>, vector<16x16xf32> -> vector<16x16xf32>
    %122 = arith.addf %118, %121 : vector<16x16xf32>
    %c0_53 = arith.constant 0 : index
    %c0_54 = arith.constant 0 : index
    %123 = vector.load %arg14[%c0_53, %c0_54] : memref<1x16xf32, #tpu.memory_space<vmem>>, vector<1x16xf32>
    %124 = vector.broadcast %123 : vector<1x16xf32> to vector<16x16xf32>
    %125 = arith.addf %122, %124 : vector<16x16xf32>
    %126 = tpu.iota {dimensions = array<i32: 1>} : vector<8x16xi32>
    %127 = tpu.iota {dimensions = array<i32: 0>} : vector<8x16xi32>
    %c2_i32_55 = arith.constant 2 : i32
    %128 = vector.broadcast %c2_i32_55 : i32 to vector<8x16xi32>
    %129 = arith.muli %128, %127 : vector<8x16xi32>
    %130 = arith.cmpi eq, %126, %129 : vector<8x16xi32>
    %cst_56 = arith.constant 1.000000e+00 : f32
    %cst_57 = arith.constant 0.000000e+00 : f32
    %131 = vector.broadcast %cst_56 : f32 to vector<8x16xf32>
    %132 = vector.broadcast %cst_57 : f32 to vector<8x16xf32>
    %133 = arith.select %130, %131, %132 : vector<8x16xi1>, vector<8x16xf32>
    %cst_58 = arith.constant dense<0.000000e+00> : vector<8x16xf32>
    %134 = tpu.matmul %133, %125, %cst_58 {dimension_numbers = #tpu.dot_dimension_numbers<[1], [0], [0], [1], [0, 0, 1, 1], [], []>} : vector<8x16xf32>, vector<16x16xf32>, vector<8x16xf32> -> vector<8x16xf32>
    %cst_59 = arith.constant 0.000000e+00 : f32
    %135 = vector.broadcast %cst_59 : f32 to vector<8x16xf32>
    %136 = arith.cmpf oge, %134, %135 : vector<8x16xf32>
    %cst_60 = arith.constant 3.000000e-01 : f32
    %137 = vector.broadcast %cst_60 : f32 to vector<8x16xf32>
    %138 = arith.mulf %137, %134 : vector<8x16xf32>
    %139 = arith.select %136, %134, %138 : vector<8x16xi1>, vector<8x16xf32>
    %cst_61 = arith.constant dense<0.000000e+00> : vector<16xf32>
    %140 = vector.multi_reduction <add>, %139, %cst_61 [0] : vector<8x16xf32> to vector<16xf32>
    %141 = vector.shape_cast %140 : vector<16xf32> to vector<1x16xf32>
    %cst_62 = arith.constant 8.000000e+00 : f32
    %142 = vector.broadcast %cst_62 : f32 to vector<1x16xf32>
    %143 = arith.divf %141, %142 : vector<1x16xf32>
    %144 = vector.broadcast %143 : vector<1x16xf32> to vector<8x16xf32>
    %145 = arith.subf %139, %144 : vector<8x16xf32>
    %146 = arith.mulf %145, %145 : vector<8x16xf32>
    %cst_63 = arith.constant dense<0.000000e+00> : vector<16xf32>
    %147 = vector.multi_reduction <add>, %146, %cst_63 [0] : vector<8x16xf32> to vector<16xf32>
    %148 = vector.shape_cast %147 : vector<16xf32> to vector<1x16xf32>
    %cst_64 = arith.constant 8.000000e+00 : f32
    %149 = vector.broadcast %cst_64 : f32 to vector<1x16xf32>
    %150 = arith.divf %148, %149 : vector<1x16xf32>
    %151 = vector.broadcast %143 : vector<1x16xf32> to vector<8x16xf32>
    %152 = arith.subf %139, %151 : vector<8x16xf32>
    %cst_65 = arith.constant 9.99999974E-6 : f32
    %153 = vector.broadcast %cst_65 : f32 to vector<1x16xf32>
    %154 = arith.addf %150, %153 : vector<1x16xf32>
    %155 = math.rsqrt %154 : vector<1x16xf32>
    %156 = vector.broadcast %155 : vector<1x16xf32> to vector<8x16xf32>
    %157 = arith.mulf %152, %156 : vector<8x16xf32>
    %c0_66 = arith.constant 0 : index
    %c0_67 = arith.constant 0 : index
    %158 = vector.load %arg15[%c0_66, %c0_67] : memref<1x16xf32, #tpu.memory_space<vmem>>, vector<1x16xf32>
    %159 = vector.broadcast %158 : vector<1x16xf32> to vector<8x16xf32>
    %160 = arith.mulf %157, %159 : vector<8x16xf32>
    %c0_68 = arith.constant 0 : index
    %c0_69 = arith.constant 0 : index
    %161 = vector.load %arg16[%c0_68, %c0_69] : memref<1x16xf32, #tpu.memory_space<vmem>>, vector<1x16xf32>
    %162 = vector.broadcast %161 : vector<1x16xf32> to vector<8x16xf32>
    %163 = arith.addf %160, %162 : vector<8x16xf32>
    %c0_70 = arith.constant 0 : index
    %c0_71 = arith.constant 0 : index
    %c0_72 = arith.constant 0 : index
    %164 = vector.load %arg4[%c0_70, %c0_71, %c0_72] : memref<1x8x1xf32, #tpu.memory_space<vmem>>, vector<1x8x1xf32>
    %165 = vector.shape_cast %164 : vector<1x8x1xf32> to vector<8x1xf32>
    %166 = vector.broadcast %165 : vector<8x1xf32> to vector<8x16xf32>
    %167 = arith.mulf %163, %166 : vector<8x16xf32>
    %c0_73 = arith.constant 0 : index
    %c0_74 = arith.constant 0 : index
    %c0_75 = arith.constant 0 : index
    %168 = vector.load %arg17[%c0_73, %c0_74, %c0_75] : memref<1x8x16xf32, #tpu.memory_space<vmem>>, vector<1x8x16xf32>
    %169 = vector.shape_cast %168 : vector<1x8x16xf32> to vector<8x16xf32>
    %170 = vector.shape_cast %167 : vector<8x16xf32> to vector<1x8x16xf32>
    tpu.vector_store %arg17[%c0_73, %c0_74, %c0_75], %170 {strides = array<i32>} : memref<1x8x16xf32, #tpu.memory_space<vmem>>, vector<1x8x16xf32>,
    return
  }
  func.func @transform_0(%arg0: i32) -> (i32, i32, i32) {
    %c0_i32 = arith.constant 0 : i32
    %c0_i32_0 = arith.constant 0 : i32
    %c0_i32_1 = arith.constant 0 : i32
    return %arg0, %c0_i32, %c0_i32_0 : i32, i32, i32
  }
  func.func @transform_1(%arg0: i32) -> (i32, i32) {
    %c0_i32 = arith.constant 0 : i32
    %c0_i32_0 = arith.constant 0 : i32
    %c0_i32_1 = arith.constant 0 : i32
    return %c0_i32, %c0_i32_0 : i32, i32
  }
  func.func @transform_2(%arg0: i32) -> (i32, i32, i32) {
    %c0_i32 = arith.constant 0 : i32
    %c0_i32_0 = arith.constant 0 : i32
    %c0_i32_1 = arith.constant 0 : i32
    return %arg0, %c0_i32, %c0_i32_0 : i32, i32, i32
  }
  func.func @transform_3(%arg0: i32) -> (i32, i32, i32) {
    %c0_i32 = arith.constant 0 : i32
    %c0_i32_0 = arith.constant 0 : i32
    %c0_i32_1 = arith.constant 0 : i32
    return %arg0, %c0_i32, %c0_i32_0 : i32, i32, i32
  }
  func.func @transform_4(%arg0: i32) -> (i32, i32) {
    %c0_i32 = arith.constant 0 : i32
    %c0_i32_0 = arith.constant 0 : i32
    %c0_i32_1 = arith.constant 0 : i32
    return %c0_i32, %c0_i32_0 : i32, i32
  }
  func.func @transform_5(%arg0: i32) -> (i32, i32) {
    %c0_i32 = arith.constant 0 : i32
    %c0_i32_0 = arith.constant 0 : i32
    %c0_i32_1 = arith.constant 0 : i32
    return %c0_i32, %c0_i32_0 : i32, i32
  }
  func.func @transform_6(%arg0: i32) -> (i32, i32) {
    %c0_i32 = arith.constant 0 : i32
    %c0_i32_0 = arith.constant 0 : i32
    %c0_i32_1 = arith.constant 0 : i32
    return %c0_i32, %c0_i32_0 : i32, i32
  }
  func.func @transform_7(%arg0: i32) -> (i32, i32) {
    %c0_i32 = arith.constant 0 : i32
    %c0_i32_0 = arith.constant 0 : i32
    %c0_i32_1 = arith.constant 0 : i32
    return %c0_i32, %c0_i32_0 : i32, i32
  }
  func.func @transform_8(%arg0: i32) -> (i32, i32) {
    %c0_i32 = arith.constant 0 : i32
    %c0_i32_0 = arith.constant 0 : i32
    %c0_i32_1 = arith.constant 0 : i32
    return %c0_i32, %c0_i32_0 : i32, i32
  }
  func.func @transform_9(%arg0: i32) -> (i32, i32) {
    %c0_i32 = arith.constant 0 : i32
    %c0_i32_0 = arith.constant 0 : i32
    %c0_i32_1 = arith.constant 0 : i32
    return %c0_i32, %c0_i32_0 : i32, i32
  }
  func.func @transform_10(%arg0: i32) -> (i32, i32) {
    %c0_i32 = arith.constant 0 : i32
    %c0_i32_0 = arith.constant 0 : i32
    %c0_i32_1 = arith.constant 0 : i32
    return %c0_i32, %c0_i32_0 : i32, i32
  }
  func.func @transform_11(%arg0: i32) -> (i32, i32) {
    %c0_i32 = arith.constant 0 : i32
    %c0_i32_0 = arith.constant 0 : i32
    %c0_i32_1 = arith.constant 0 : i32
    return %c0_i32, %c0_i32_0 : i32, i32
  }
  func.func @transform_12(%arg0: i32) -> (i32, i32) {
    %c0_i32 = arith.constant 0 : i32
    %c0_i32_0 = arith.constant 0 : i32
    %c0_i32_1 = arith.constant 0 : i32
    return %c0_i32, %c0_i32_0 : i32, i32
  }
  func.func @transform_13(%arg0: i32) -> (i32, i32) {
    %c0_i32 = arith.constant 0 : i32
    %c0_i32_0 = arith.constant 0 : i32
    %c0_i32_1 = arith.constant 0 : i32
    return %c0_i32, %c0_i32_0 : i32, i32
  }
  func.func @transform_14(%arg0: i32) -> (i32, i32) {
    %c0_i32 = arith.constant 0 : i32
    %c0_i32_0 = arith.constant 0 : i32
    %c0_i32_1 = arith.constant 0 : i32
    return %c0_i32, %c0_i32_0 : i32, i32
  }
  func.func @transform_15(%arg0: i32) -> (i32, i32) {
    %c0_i32 = arith.constant 0 : i32
    %c0_i32_0 = arith.constant 0 : i32
    %c0_i32_1 = arith.constant 0 : i32
    return %c0_i32, %c0_i32_0 : i32, i32
  }
  func.func @transform_16(%arg0: i32) -> (i32, i32, i32) {
    %c0_i32 = arith.constant 0 : i32
    %c0_i32_0 = arith.constant 0 : i32
    %c0_i32_1 = arith.constant 0 : i32
    return %arg0, %c0_i32, %c0_i32_0 : i32, i32, i32
  }
}

</mosaic_0001>

<llo_original>
// kernel: tpu_custom_call.1
$region0: #{tpu_custom_call.1}
  #allocation0 [shape = 'u32[]', space=smem, size = 0x4, offset = 0x4, fixed_abs, tag = 'smem constant byte address 0x4 - core index']
  #allocation1 [shape = 'u32[144,128]{1,0:T(1,128)}', space=vmem, size = 0x12000, scoped, tag = 'internal scratch']
  %s0 = inlined_call_operand.vmem [shape: f32[2,32,16], index: 0, kind: input, shape index: {}]
  %s1 = inlined_call_operand.vmem [shape: f32[32,2], index: 1, kind: input, shape index: {}]
  %s2 = inlined_call_operand.vmem [shape: f32[2,32,1], index: 2, kind: input, shape index: {}]
  %s3 = inlined_call_operand.vmem [shape: f32[2,8,1], index: 3, kind: input, shape index: {}]
  %s4 = inlined_call_operand.vmem [shape: f32[54,8], index: 4, kind: input, shape index: {}]
  %s5 = inlined_call_operand.vmem [shape: f32[1,8], index: 5, kind: input, shape index: {}]
  %s6 = inlined_call_operand.vmem [shape: f32[1,8], index: 6, kind: input, shape index: {}]
  %s7 = inlined_call_operand.vmem [shape: f32[1,8], index: 7, kind: input, shape index: {}]
  %s8 = inlined_call_operand.vmem [shape: f32[24,8], index: 8, kind: input, shape index: {}]
  %s9 = inlined_call_operand.vmem [shape: f32[1,8], index: 9, kind: input, shape index: {}]
  %s10 = inlined_call_operand.vmem [shape: f32[1,8], index: 10, kind: input, shape index: {}]
  %s11 = inlined_call_operand.vmem [shape: f32[1,8], index: 11, kind: input, shape index: {}]
  %s12 = inlined_call_operand.vmem [shape: f32[24,16], index: 12, kind: input, shape index: {}]
  %s13 = inlined_call_operand.vmem [shape: f32[1,16], index: 13, kind: input, shape index: {}]
  %s14 = inlined_call_operand.vmem [shape: f32[1,16], index: 14, kind: input, shape index: {}]
  %s15 = inlined_call_operand.vmem [shape: f32[1,16], index: 15, kind: input, shape index: {}]
  %s16 = inlined_call_operand.hbm [shape: f32[2,8,16], index: 16, kind: output, shape index: {}]
  %s17 = sld [smem:[#allocation0]]
  $region97: #{tpu_custom_call.1} parent=0
    _
  %s19 = ssub.s32 1, %s17
  %s20 = scalar_select 0, %s19, %s17
  $region1: #{tpu_custom_call.1} parent=0
    #allocation2 [shape = 'u8[8192]{0}', space=vmem, size = 0x2000, scoped, tag = 'output window, operand 0']
    #allocation3 [shape = 's32[2]{0}', space=sflag, size = 0x8, scoped, tag = 'scoped memory for tpu_custom_call.1']
    %21 = vsyncpa [#allocation3], 0
    %s22 = scalar_lea.sflag [#allocation3], 1
    %23 = vsyncpa %s22, 0
    loop: start=0, step=1, limit=4
    $region2: #{tpu_custom_call.1} parent=1 // loop_pre_header
      _
    $region3: #{tpu_custom_call.1} parent=1 // loop_header
      %s25 = sphi 0, %s29
      %p26 = scmp.ge.s32.totalorder %s25, 4
      %s35 = sphi 0, %s37
      %s38 = sphi 0, %s35
      %s39 = sphi 0, %s38
      %s55 = sphi 0, %s39
      %s59 = sphi 0, %s59
      %s61 = sphi 0, %s59
      %s62 = sphi 0, %s61
      %s76 = sphi 0, %s62
      %s82 = sphi 0, %s84
      %s85 = sphi 0, %s82
      %s86 = sphi 0, %s85
      %s102 = sphi 0, %s86
      %s108 = sphi 0, %s110
      %s111 = sphi 0, %s108
      %s112 = sphi 0, %s111
      %s128 = sphi 0, %s112
      %s132 = sphi 0, %s132
      %s134 = sphi 0, %s132
      %s135 = sphi 0, %s134
      %s149 = sphi 0, %s135
      %s153 = sphi 0, %s153
      %s155 = sphi 0, %s153
      %s156 = sphi 0, %s155
      %s170 = sphi 0, %s156
      %s174 = sphi 0, %s174
      %s176 = sphi 0, %s174
      %s177 = sphi 0, %s176
      %s191 = sphi 0, %s177
      %s195 = sphi 0, %s195
      %s197 = sphi 0, %s195
      %s198 = sphi 0, %s197
      %s212 = sphi 0, %s198
      %s216 = sphi 0, %s216
      %s218 = sphi 0, %s216
      %s219 = sphi 0, %s218
      %s233 = sphi 0, %s219
      %s237 = sphi 0, %s237
      %s239 = sphi 0, %s237
      %s240 = sphi 0, %s239
      %s254 = sphi 0, %s240
      %s258 = sphi 0, %s258
      %s260 = sphi 0, %s258
      %s261 = sphi 0, %s260
      %s275 = sphi 0, %s261
      %s279 = sphi 0, %s279
      %s281 = sphi 0, %s279
      %s282 = sphi 0, %s281
      %s296 = sphi 0, %s282
      %s300 = sphi 0, %s300
      %s302 = sphi 0, %s300
      %s303 = sphi 0, %s302
      %s317 = sphi 0, %s303
      %s321 = sphi 0, %s321
      %s323 = sphi 0, %s321
      %s324 = sphi 0, %s323
      %s338 = sphi 0, %s324
      %s342 = sphi 0, %s342
      %s344 = sphi 0, %s342
      %s345 = sphi 0, %s344
      %s359 = sphi 0, %s345
      %s363 = sphi 0, %s363
      %s365 = sphi 0, %s363
      %s366 = sphi 0, %s365
      %s380 = sphi 0, %s366
      %s386 = sphi 0, %s388
      %s389 = sphi 0, %s386
      %s390 = sphi 0, %s389
      %s406 = sphi 0, %s390
    $region4: #{tpu_custom_call.1} parent=1 // loop_header_branch
      %28 = sbr.rel (%p26) target = $region8
    $region5: #{tpu_custom_call.1} parent=1 // loop_body
      %s30 = ssub.s32 %s25, 1
      %s31 = ssub.s32 %s25, 2
      %s32 = sadd.s32 %s25, 1
      %s33 = ssub.s32 %s25, %s32
      %p34 = scmp.eq.s32.totalorder %s33, 0
      %s36 = sadd.s32 %s35, 1
      %s37 = scalar_select %p34, %s35, %s36
      %p40 = pneg %p34
      %p41 = scmp.eq.s32.totalorder %s25, 1
      %p42 = por %p40, %p41
      %p43 = scmp.ne.s32.totalorder %s35, %s38
      %p44 = scmp.eq.s32.totalorder %s25, 0
      %p45 = por %p43, %p44
      %p46 = scmp.ne.s32.totalorder %s35, %s38
      %p47 = scmp.eq.s32.totalorder %s30, 1
      %p48 = por %p46, %p47
      %p49 = scmp.ne.s32.totalorder %s38, %s39
      %p50 = scmp.eq.s32.totalorder %s30, 0
      %p51 = por %p49, %p50
      %p52 = scmp.ne.s32.totalorder %s38, %s39
      %p53 = scmp.eq.s32.totalorder %s31, 1
      %p54 = por %p52, %p53
      %p56 = scmp.ne.s32.totalorder %s39, %s55
      %p57 = scmp.eq.s32.totalorder %s31, 0
      %p58 = por %p56, %p57
      %s60 = sadd.s32 %s59, 1
      %p63 = scmp.eq.s32.totalorder %s25, 1
      %p64 = scmp.ne.s32.totalorder %s59, %s61
      %p65 = scmp.eq.s32.totalorder %s25, 0
      %p66 = por %p64, %p65
      %p67 = scmp.ne.s32.totalorder %s59, %s61
      %p68 = scmp.eq.s32.totalorder %s30, 1
      %p69 = por %p67, %p68
      %p70 = scmp.ne.s32.totalorder %s61, %s62
      %p71 = scmp.eq.s32.totalorder %s30, 0
      %p72 = por %p70, %p71
      %p73 = scmp.ne.s32.totalorder %s61, %s62
      %p74 = scmp.eq.s32.totalorder %s31, 1
      %p75 = por %p73, %p74
      %p77 = scmp.ne.s32.totalorder %s62, %s76
      %p78 = scmp.eq.s32.totalorder %s31, 0
      %p79 = por %p77, %p78
      %s80 = ssub.s32 %s25, %s32
      %p81 = scmp.eq.s32.totalorder %s80, 0
      %s83 = sadd.s32 %s82, 1
      %s84 = scalar_select %p81, %s82, %s83
      %p87 = pneg %p81
      %p88 = scmp.eq.s32.totalorder %s25, 1
      %p89 = por %p87, %p88
      %p90 = scmp.ne.s32.totalorder %s82, %s85
      %p91 = scmp.eq.s32.totalorder %s25, 0
      %p92 = por %p90, %p91
      %p93 = scmp.ne.s32.totalorder %s82, %s85
      %p94 = scmp.eq.s32.totalorder %s30, 1
      %p95 = por %p93, %p94
      %p96 = scmp.ne.s32.totalorder %s85, %s86
      %p97 = scmp.eq.s32.totalorder %s30, 0
      %p98 = por %p96, %p97
      %p99 = scmp.ne.s32.totalorder %s85, %s86
      %p100 = scmp.eq.s32.totalorder %s31, 1
      %p101 = por %p99, %p100
      %p103 = scmp.ne.s32.totalorder %s86, %s102
      %p104 = scmp.eq.s32.totalorder %s31, 0
      %p105 = por %p103, %p104
      %s106 = ssub.s32 %s25, %s32
      %p107 = scmp.eq.s32.totalorder %s106, 0
      %s109 = sadd.s32 %s108, 1
      %s110 = scalar_select %p107, %s108, %s109
      %p113 = pneg %p107
      %p114 = scmp.eq.s32.totalorder %s25, 1
      %p115 = por %p113, %p114
      %p116 = scmp.ne.s32.totalorder %s108, %s111
      %p117 = scmp.eq.s32.totalorder %s25, 0
      %p118 = por %p116, %p117
      %p119 = scmp.ne.s32.totalorder %s108, %s111
      %p120 = scmp.eq.s32.totalorder %s30, 1
      %p121 = por %p119, %p120
      %p122 = scmp.ne.s32.totalorder %s111, %s112
      %p123 = scmp.eq.s32.totalorder %s30, 0
      %p124 = por %p122, %p123
      %p125 = scmp.ne.s32.totalorder %s111, %s112
      %p126 = scmp.eq.s32.totalorder %s31, 1
      %p127 = por %p125, %p126
      %p129 = scmp.ne.s32.totalorder %s112, %s128
      %p130 = scmp.eq.s32.totalorder %s31, 0
      %p131 = por %p129, %p130
      %s133 = sadd.s32 %s132, 1
      %p136 = scmp.eq.s32.totalorder %s25, 1
      %p137 = scmp.ne.s32.totalorder %s132, %s134
      %p138 = scmp.eq.s32.totalorder %s25, 0
      %p139 = por %p137, %p138
      %p140 = scmp.ne.s32.totalorder %s132, %s134
      %p141 = scmp.eq.s32.totalorder %s30, 1
      %p142 = por %p140, %p141
      %p143 = scmp.ne.s32.totalorder %s134, %s135
      %p144 = scmp.eq.s32.totalorder %s30, 0
      %p145 = por %p143, %p144
      %p146 = scmp.ne.s32.totalorder %s134, %s135
      %p147 = scmp.eq.s32.totalorder %s31, 1
      %p148 = por %p146, %p147
      %p150 = scmp.ne.s32.totalorder %s135, %s149
      %p151 = scmp.eq.s32.totalorder %s31, 0
      %p152 = por %p150, %p151
      %s154 = sadd.s32 %s153, 1
      %p157 = scmp.eq.s32.totalorder %s25, 1
      %p158 = scmp.ne.s32.totalorder %s153, %s155
      %p159 = scmp.eq.s32.totalorder %s25, 0
      %p160 = por %p158, %p159
      %p161 = scmp.ne.s32.totalorder %s153, %s155
      %p162 = scmp.eq.s32.totalorder %s30, 1
      %p163 = por %p161, %p162
      %p164 = scmp.ne.s32.totalorder %s155, %s156
      %p165 = scmp.eq.s32.totalorder %s30, 0
      %p166 = por %p164, %p165
      %p167 = scmp.ne.s32.totalorder %s155, %s156
      %p168 = scmp.eq.s32.totalorder %s31, 1
      %p169 = por %p167, %p168
      %p171 = scmp.ne.s32.totalorder %s156, %s170
      %p172 = scmp.eq.s32.totalorder %s31, 0
      %p173 = por %p171, %p172
      %s175 = sadd.s32 %s174, 1
      %p178 = scmp.eq.s32.totalorder %s25, 1
      %p179 = scmp.ne.s32.totalorder %s174, %s176
      %p180 = scmp.eq.s32.totalorder %s25, 0
      %p181 = por %p179, %p180
      %p182 = scmp.ne.s32.totalorder %s174, %s176
      %p183 = scmp.eq.s32.totalorder %s30, 1
      %p184 = por %p182, %p183
      %p185 = scmp.ne.s32.totalorder %s176, %s177
      %p186 = scmp.eq.s32.totalorder %s30, 0
      %p187 = por %p185, %p186
      %p188 = scmp.ne.s32.totalorder %s176, %s177
      %p189 = scmp.eq.s32.totalorder %s31, 1
      %p190 = por %p188, %p189
      %p192 = scmp.ne.s32.totalorder %s177, %s191
      %p193 = scmp.eq.s32.totalorder %s31, 0
      %p194 = por %p192, %p193
      %s196 = sadd.s32 %s195, 1
      %p199 = scmp.eq.s32.totalorder %s25, 1
      %p200 = scmp.ne.s32.totalorder %s195, %s197
      %p201 = scmp.eq.s32.totalorder %s25, 0
      %p202 = por %p200, %p201
      %p203 = scmp.ne.s32.totalorder %s195, %s197
      %p204 = scmp.eq.s32.totalorder %s30, 1
      %p205 = por %p203, %p204
      %p206 = scmp.ne.s32.totalorder %s197, %s198
      %p207 = scmp.eq.s32.totalorder %s30, 0
      %p208 = por %p206, %p207
      %p209 = scmp.ne.s32.totalorder %s197, %s198
      %p210 = scmp.eq.s32.totalorder %s31, 1
      %p211 = por %p209, %p210
      %p213 = scmp.ne.s32.totalorder %s198, %s212
      %p214 = scmp.eq.s32.totalorder %s31, 0
      %p215 = por %p213, %p214
      %s217 = sadd.s32 %s216, 1
      %p220 = scmp.eq.s32.totalorder %s25, 1
      %p221 = scmp.ne.s32.totalorder %s216, %s218
      %p222 = scmp.eq.s32.totalorder %s25, 0
      %p223 = por %p221, %p222
      %p224 = scmp.ne.s32.totalorder %s216, %s218
      %p225 = scmp.eq.s32.totalorder %s30, 1
      %p226 = por %p224, %p225
      %p227 = scmp.ne.s32.totalorder %s218, %s219
      %p228 = scmp.eq.s32.totalorder %s30, 0
      %p229 = por %p227, %p228
      %p230 = scmp.ne.s32.totalorder %s218, %s219
      %p231 = scmp.eq.s32.totalorder %s31, 1
      %p232 = por %p230, %p231
      %p234 = scmp.ne.s32.totalorder %s219, %s233
      %p235 = scmp.eq.s32.totalorder %s31, 0
      %p236 = por %p234, %p235
      %s238 = sadd.s32 %s237, 1
      %p241 = scmp.eq.s32.totalorder %s25, 1
      %p242 = scmp.ne.s32.totalorder %s237, %s239
      %p243 = scmp.eq.s32.totalorder %s25, 0
      %p244 = por %p242, %p243
      %p245 = scmp.ne.s32.totalorder %s237, %s239
      %p246 = scmp.eq.s32.totalorder %s30, 1
      %p247 = por %p245, %p246
      %p248 = scmp.ne.s32.totalorder %s239, %s240
      %p249 = scmp.eq.s32.totalorder %s30, 0
      %p250 = por %p248, %p249
      %p251 = scmp.ne.s32.totalorder %s239, %s240
      %p252 = scmp.eq.s32.totalorder %s31, 1
      %p253 = por %p251, %p252
      %p255 = scmp.ne.s32.totalorder %s240, %s254
      %p256 = scmp.eq.s32.totalorder %s31, 0
      %p257 = por %p255, %p256
      %s259 = sadd.s32 %s258, 1
      %p262 = scmp.eq.s32.totalorder %s25, 1
      %p263 = scmp.ne.s32.totalorder %s258, %s260
      %p264 = scmp.eq.s32.totalorder %s25, 0
      %p265 = por %p263, %p264
      %p266 = scmp.ne.s32.totalorder %s258, %s260
      %p267 = scmp.eq.s32.totalorder %s30, 1
      %p268 = por %p266, %p267
      %p269 = scmp.ne.s32.totalorder %s260, %s261
      %p270 = scmp.eq.s32.totalorder %s30, 0
      %p271 = por %p269, %p270
      %p272 = scmp.ne.s32.totalorder %s260, %s261
      %p273 = scmp.eq.s32.totalorder %s31, 1
      %p274 = por %p272, %p273
      %p276 = scmp.ne.s32.totalorder %s261, %s275
      %p277 = scmp.eq.s32.totalorder %s31, 0
      %p278 = por %p276, %p277
      %s280 = sadd.s32 %s279, 1
      %p283 = scmp.eq.s32.totalorder %s25, 1
      %p284 = scmp.ne.s32.totalorder %s279, %s281
      %p285 = scmp.eq.s32.totalorder %s25, 0
      %p286 = por %p284, %p285
      %p287 = scmp.ne.s32.totalorder %s279, %s281
      %p288 = scmp.eq.s32.totalorder %s30, 1
      %p289 = por %p287, %p288
      %p290 = scmp.ne.s32.totalorder %s281, %s282
      %p291 = scmp.eq.s32.totalorder %s30, 0
      %p292 = por %p290, %p291
      %p293 = scmp.ne.s32.totalorder %s281, %s282
      %p294 = scmp.eq.s32.totalorder %s31, 1
      %p295 = por %p293, %p294
      %p297 = scmp.ne.s32.totalorder %s282, %s296
      %p298 = scmp.eq.s32.totalorder %s31, 0
      %p299 = por %p297, %p298
      %s301 = sadd.s32 %s300, 1
      %p304 = scmp.eq.s32.totalorder %s25, 1
      %p305 = scmp.ne.s32.totalorder %s300, %s302
      %p306 = scmp.eq.s32.totalorder %s25, 0
      %p307 = por %p305, %p306
      %p308 = scmp.ne.s32.totalorder %s300, %s302
      %p309 = scmp.eq.s32.totalorder %s30, 1
      %p310 = por %p308, %p309
      %p311 = scmp.ne.s32.totalorder %s302, %s303
      %p312 = scmp.eq.s32.totalorder %s30, 0
      %p313 = por %p311, %p312
      %p314 = scmp.ne.s32.totalorder %s302, %s303
      %p315 = scmp.eq.s32.totalorder %s31, 1
      %p316 = por %p314, %p315
      %p318 = scmp.ne.s32.totalorder %s303, %s317
      %p319 = scmp.eq.s32.totalorder %s31, 0
      %p320 = por %p318, %p319
      %s322 = sadd.s32 %s321, 1
      %p325 = scmp.eq.s32.totalorder %s25, 1
      %p326 = scmp.ne.s32.totalorder %s321, %s323
      %p327 = scmp.eq.s32.totalorder %s25, 0
      %p328 = por %p326, %p327
      %p329 = scmp.ne.s32.totalorder %s321, %s323
      %p330 = scmp.eq.s32.totalorder %s30, 1
      %p331 = por %p329, %p330
      %p332 = scmp.ne.s32.totalorder %s323, %s324
      %p333 = scmp.eq.s32.totalorder %s30, 0
      %p334 = por %p332, %p333
      %p335 = scmp.ne.s32.totalorder %s323, %s324
      %p336 = scmp.eq.s32.totalorder %s31, 1
      %p337 = por %p335, %p336
      %p339 = scmp.ne.s32.totalorder %s324, %s338
      %p340 = scmp.eq.s32.totalorder %s31, 0
      %p341 = por %p339, %p340
      %s343 = sadd.s32 %s342, 1
      %p346 = scmp.eq.s32.totalorder %s25, 1
      %p347 = scmp.ne.s32.totalorder %s342, %s344
      %p348 = scmp.eq.s32.totalorder %s25, 0
      %p349 = por %p347, %p348
      %p350 = scmp.ne.s32.totalorder %s342, %s344
      %p351 = scmp.eq.s32.totalorder %s30, 1
      %p352 = por %p350, %p351
      %p353 = scmp.ne.s32.totalorder %s344, %s345
      %p354 = scmp.eq.s32.totalorder %s30, 0
      %p355 = por %p353, %p354
      %p356 = scmp.ne.s32.totalorder %s344, %s345
      %p357 = scmp.eq.s32.totalorder %s31, 1
      %p358 = por %p356, %p357
      %p360 = scmp.ne.s32.totalorder %s345, %s359
      %p361 = scmp.eq.s32.totalorder %s31, 0
      %p362 = por %p360, %p361
      %s364 = sadd.s32 %s363, 1
      %p367 = scmp.eq.s32.totalorder %s25, 1
      %p368 = scmp.ne.s32.totalorder %s363, %s365
      %p369 = scmp.eq.s32.totalorder %s25, 0
      %p370 = por %p368, %p369
      %p371 = scmp.ne.s32.totalorder %s363, %s365
      %p372 = scmp.eq.s32.totalorder %s30, 1
      %p373 = por %p371, %p372
      %p374 = scmp.ne.s32.totalorder %s365, %s366
      %p375 = scmp.eq.s32.totalorder %s30, 0
      %p376 = por %p374, %p375
      %p377 = scmp.ne.s32.totalorder %s365, %s366
      %p378 = scmp.eq.s32.totalorder %s31, 1
      %p379 = por %p377, %p378
      %p381 = scmp.ne.s32.totalorder %s366, %s380
      %p382 = scmp.eq.s32.totalorder %s31, 0
      %p383 = por %p381, %p382
      %s384 = ssub.s32 %s25, %s32
      %p385 = scmp.eq.s32.totalorder %s384, 0
      %s387 = sadd.s32 %s386, 1
      %s388 = scalar_select %p385, %s386, %s387
      %p391 = pneg %p385
      %p392 = scmp.eq.s32.totalorder %s25, 1
      %p393 = por %p391, %p392
      %p394 = scmp.ne.s32.totalorder %s386, %s389
      %p395 = scmp.eq.s32.totalorder %s25, 0
      %p396 = por %p394, %p395
      %p397 = scmp.ne.s32.totalorder %s386, %s389
      %p398 = scmp.eq.s32.totalorder %s30, 1
      %p399 = por %p397, %p398
      %p400 = scmp.ne.s32.totalorder %s389, %s390
      %p401 = scmp.eq.s32.totalorder %s30, 0
      %p402 = por %p400, %p401
      %p403 = scmp.ne.s32.totalorder %s389, %s390
      %p404 = scmp.eq.s32.totalorder %s31, 1
      %p405 = por %p403, %p404
      %p407 = scmp.ne.s32.totalorder %s390, %s406
      %p408 = scmp.eq.s32.totalorder %s31, 0
      %p409 = por %p407, %p408
      %p410 = scmp.le.s32.totalorder 1, %s25
      %p411 = scmp.lt.s32.totalorder %s25, 3
      %p412 = pnand %p410, %p411
      %p413 = pneg %p412
      // Predicated region
      $region9: #{tpu_custom_call.1} parent=5 // pred_check
        _
      $region10: #{tpu_custom_call.1} parent=5 // pred_check_branch
        %415 = sbr.rel (%p412) target = $region12
      $region11: #{tpu_custom_call.1} parent=5 // pred_region
        %s416 = ssub.s32 %s25, 1
        // Predicated region
        $region13: #{tpu_custom_call.1} parent=11 // pred_check
          %p417 = pneg %p72
        $region14: #{tpu_custom_call.1} parent=11 // pred_check_branch
          %419 = sbr.rel (%p417) target = $region16
        $region15: #{tpu_custom_call.1} parent=11 // pred_region
          _
        $region16: #{tpu_custom_call.1} parent=11 // pred_fallthru
          _
        // Predicated region
        $region17: #{tpu_custom_call.1} parent=11 // pred_check
          %p420 = pneg %p145
        $region18: #{tpu_custom_call.1} parent=11 // pred_check_branch
          %422 = sbr.rel (%p420) target = $region20
        $region19: #{tpu_custom_call.1} parent=11 // pred_region
          _
        $region20: #{tpu_custom_call.1} parent=11 // pred_fallthru
          _
        // Predicated region
        $region21: #{tpu_custom_call.1} parent=11 // pred_check
          %p423 = pneg %p166
        $region22: #{tpu_custom_call.1} parent=11 // pred_check_branch
          %425 = sbr.rel (%p423) target = $region24
        $region23: #{tpu_custom_call.1} parent=11 // pred_region
          _
        $region24: #{tpu_custom_call.1} parent=11 // pred_fallthru
          _
        // Predicated region
        $region25: #{tpu_custom_call.1} parent=11 // pred_check
          %p426 = pneg %p187
        $region26: #{tpu_custom_call.1} parent=11 // pred_check_branch
          %428 = sbr.rel (%p426) target = $region28
        $region27: #{tpu_custom_call.1} parent=11 // pred_region
          _
        $region28: #{tpu_custom_call.1} parent=11 // pred_fallthru
          _
        // Predicated region
        $region29: #{tpu_custom_call.1} parent=11 // pred_check
          %p429 = pneg %p208
        $region30: #{tpu_custom_call.1} parent=11 // pred_check_branch
          %431 = sbr.rel (%p429) target = $region32
        $region31: #{tpu_custom_call.1} parent=11 // pred_region
          _
        $region32: #{tpu_custom_call.1} parent=11 // pred_fallthru
          _
        // Predicated region
        $region33: #{tpu_custom_call.1} parent=11 // pred_check
          %p432 = pneg %p229
        $region34: #{tpu_custom_call.1} parent=11 // pred_check_branch
          %434 = sbr.rel (%p432) target = $region36
        $region35: #{tpu_custom_call.1} parent=11 // pred_region
          _
        $region36: #{tpu_custom_call.1} parent=11 // pred_fallthru
          _
        // Predicated region
        $region37: #{tpu_custom_call.1} parent=11 // pred_check
          %p435 = pneg %p250
        $region38: #{tpu_custom_call.1} parent=11 // pred_check_branch
          %437 = sbr.rel (%p435) target = $region40
        $region39: #{tpu_custom_call.1} parent=11 // pred_region
          _
        $region40: #{tpu_custom_call.1} parent=11 // pred_fallthru
          _
        // Predicated region
        $region41: #{tpu_custom_call.1} parent=11 // pred_check
          %p438 = pneg %p271
        $region42: #{tpu_custom_call.1} parent=11 // pred_check_branch
          %440 = sbr.rel (%p438) target = $region44
        $region43: #{tpu_custom_call.1} parent=11 // pred_region
          _
        $region44: #{tpu_custom_call.1} parent=11 // pred_fallthru
          _
        // Predicated region
        $region45: #{tpu_custom_call.1} parent=11 // pred_check
          %p441 = pneg %p292
        $region46: #{tpu_custom_call.1} parent=11 // pred_check_branch
          %443 = sbr.rel (%p441) target = $region48
        $region47: #{tpu_custom_call.1} parent=11 // pred_region
          _
        $region48: #{tpu_custom_call.1} parent=11 // pred_fallthru
          _
        // Predicated region
        $region49: #{tpu_custom_call.1} parent=11 // pred_check
          %p444 = pneg %p313
        $region50: #{tpu_custom_call.1} parent=11 // pred_check_branch
          %446 = sbr.rel (%p444) target = $region52
        $region51: #{tpu_custom_call.1} parent=11 // pred_region
          _
        $region52: #{tpu_custom_call.1} parent=11 // pred_fallthru
          _
        // Predicated region
        $region53: #{tpu_custom_call.1} parent=11 // pred_check
          %p447 = pneg %p334
        $region54: #{tpu_custom_call.1} parent=11 // pred_check_branch
          %449 = sbr.rel (%p447) target = $region56
        $region55: #{tpu_custom_call.1} parent=11 // pred_region
          _
        $region56: #{tpu_custom_call.1} parent=11 // pred_fallthru
          _
        // Predicated region
        $region57: #{tpu_custom_call.1} parent=11 // pred_check
          %p450 = pneg %p355
        $region58: #{tpu_custom_call.1} parent=11 // pred_check_branch
          %452 = sbr.rel (%p450) target = $region60
        $region59: #{tpu_custom_call.1} parent=11 // pred_region
          _
        $region60: #{tpu_custom_call.1} parent=11 // pred_fallthru
          _
        // Predicated region
        $region61: #{tpu_custom_call.1} parent=11 // pred_check
          %p453 = pneg %p376
        $region62: #{tpu_custom_call.1} parent=11 // pred_check_branch
          %455 = sbr.rel (%p453) target = $region64
        $region63: #{tpu_custom_call.1} parent=11 // pred_region
          _
        $region64: #{tpu_custom_call.1} parent=11 // pred_fallthru
          _
      $region12: #{tpu_custom_call.1} parent=5 // pred_fallthru
        _
      %p456 = scmp.lt.s32.totalorder %s25, 2
      // Predicated region
      $region65: #{tpu_custom_call.1} parent=5 // pred_check
        %p457 = pneg %p456
      $region66: #{tpu_custom_call.1} parent=5 // pred_check_branch
        %459 = sbr.rel (%p457) target = $region68
      $region67: #{tpu_custom_call.1} parent=5 // pred_region
        // Predicated region
        $region69: #{tpu_custom_call.1} parent=67 // pred_check
          %p460 = pneg %p45
        $region70: #{tpu_custom_call.1} parent=67 // pred_check_branch
          %462 = sbr.rel (%p460) target = $region72
        $region71: #{tpu_custom_call.1} parent=67 // pred_region
          %p463 = scmp.lt.s32.totalorder %s25, 1
          %s464 = scalar_select %p463, %s25, 1
          %s465 = smul.addr %s464, 4
          %s466 = smul.addr %s465, 8
          %s467 = scalar_lea.vmem %s0, %s466
        $region72: #{tpu_custom_call.1} parent=67 // pred_fallthru
          _
        // Predicated region
        $region73: #{tpu_custom_call.1} parent=67 // pred_check
          %p468 = pneg %p92
        $region74: #{tpu_custom_call.1} parent=67 // pred_check_branch
          %470 = sbr.rel (%p468) target = $region76
        $region75: #{tpu_custom_call.1} parent=67 // pred_region
          %p471 = scmp.lt.s32.totalorder %s25, 1
          %s472 = scalar_select %p471, %s25, 1
          %s473 = smul.addr %s472, 4
          %s474 = smul.addr %s473, 8
          %s475 = scalar_lea.vmem %s2, %s474
        $region76: #{tpu_custom_call.1} parent=67 // pred_fallthru
          _
        // Predicated region
        $region77: #{tpu_custom_call.1} parent=67 // pred_check
          %p476 = pneg %p118
        $region78: #{tpu_custom_call.1} parent=67 // pred_check_branch
          %478 = sbr.rel (%p476) target = $region80
        $region79: #{tpu_custom_call.1} parent=67 // pred_region
          %p479 = scmp.lt.s32.totalorder %s25, 1
          %s480 = scalar_select %p479, %s25, 1
          %s481 = smul.addr %s480, 8
          %s482 = scalar_lea.vmem %s3, %s481
        $region80: #{tpu_custom_call.1} parent=67 // pred_fallthru
          _
      $region68: #{tpu_custom_call.1} parent=5 // pred_fallthru
        _
      %p483 = scmp.le.s32.totalorder 1, %s25
      %p484 = scmp.lt.s32.totalorder %s25, 3
      %p485 = pnand %p483, %p484
      %p486 = pneg %p485
      // Predicated region
      $region81: #{tpu_custom_call.1} parent=5 // pred_check
        _
      $region82: #{tpu_custom_call.1} parent=5 // pred_check_branch
        %488 = sbr.rel (%p485) target = $region84
      $region83: #{tpu_custom_call.1} parent=5 // pred_region
        %s489 = ssub.s32 %s25, 1
        %p490 = scmp.lt.s32.totalorder %s30, 1
        %s491 = scalar_select %p490, %s30, 1
        %s492 = smul.addr %s491, 4
        %s493 = smul.addr %s492, 8
        %s494 = scalar_lea.vmem %s0, %s493
        %p495 = pneg %p51
        %p496 = pneg %p48
        %p497 = pneg %p72
        %p498 = pneg %p69
        %p499 = scmp.lt.s32.totalorder %s30, 1
        %s500 = scalar_select %p499, %s30, 1
        %s501 = smul.addr %s500, 4
        %s502 = smul.addr %s501, 8
        %s503 = scalar_lea.vmem %s2, %s502
        %p504 = pneg %p98
        %p505 = pneg %p95
        %p506 = scmp.lt.s32.totalorder %s30, 1
        %s507 = scalar_select %p506, %s30, 1
        %s508 = smul.addr %s507, 8
        %s509 = scalar_lea.vmem %s3, %s508
        %p510 = pneg %p124
        %p511 = pneg %p121
        %p512 = pneg %p145
        %p513 = pneg %p142
        %p514 = pneg %p166
        %p515 = pneg %p163
        %p516 = pneg %p187
        %p517 = pneg %p184
        %p518 = pneg %p208
        %p519 = pneg %p205
        %p520 = pneg %p229
        %p521 = pneg %p226
        %p522 = pneg %p250
        %p523 = pneg %p247
        %p524 = pneg %p271
        %p525 = pneg %p268
        %p526 = pneg %p292
        %p527 = pneg %p289
        %p528 = pneg %p313
        %p529 = pneg %p310
        %p530 = pneg %p334
        %p531 = pneg %p331
        %p532 = pneg %p355
        %p533 = pneg %p352
        %p534 = pneg %p376
        %p535 = pneg %p373
        %p536 = pneg %p402
        %p537 = pneg %p399
        %s538 = sand.u32 %s389, 1
        %s539 = scalar_lea.sflag [#allocation3], %s538
        %s540 = sand.u32 %s389, 1
        %s541 = smul.addr %s540, 8
        %s542 = scalar_lea.vmem [#allocation2], %s541
        %p543 = scmp.lt.s32.totalorder %s30, 1
        %s544 = scalar_select %p543, %s30, 1
        %s545 = smul.addr %s544, 4
        %s546 = smul.addr %s545, 8
        %s547 = scalar_lea.vmem %s0, %s546
        %p548 = scmp.lt.s32.totalorder %s30, 1
        %s549 = scalar_select %p548, %s30, 1
        %s550 = smul.addr %s549, 4
        %s551 = smul.addr %s550, 8
        %s552 = scalar_lea.vmem %s2, %s551
        %p553 = scmp.lt.s32.totalorder %s30, 1
        %s554 = scalar_select %p553, %s30, 1
        %s555 = smul.addr %s554, 8
        %s556 = scalar_lea.vmem %s3, %s555
        %v557 = vld [vmem:[%s547] sm:$0xff]
        %v558 = vld [vmem:[%s547 + $0x8] sm:$0xff]
        %v559 = vld [vmem:[%s547 + $0x10] sm:$0xff]
        %v560 = vld [vmem:[%s547 + $0x18] sm:$0xff]
        %v561 = vld [vmem:[%s552] sm:$0xff]
        %v562 = vld [vmem:[%s552 + $0x8] sm:$0xff]
        %v563 = vld [vmem:[%s552 + $0x10] sm:$0xff]
        %v564 = vld [vmem:[%s552 + $0x18] sm:$0xff]
        %566 = vset.pattern.permute.xlu0 0
        %567 = vperm.xlu0 %566, %v561
        %v568 = vpop.permute.xlu0 %567
        %571 = vset.pattern.permute.xlu0 0
        %572 = vperm.xlu0 %571, %v562
        %v573 = vpop.permute.xlu0 %572
        %576 = vset.pattern.permute.xlu0 0
        %577 = vperm.xlu0 %576, %v563
        %v578 = vpop.permute.xlu0 %577
        %581 = vset.pattern.permute.xlu0 0
        %582 = vperm.xlu0 %581, %v564
        %v583 = vpop.permute.xlu0 %582
        %v585 = vmul.f32 %v557, %v568
        %v586 = vmul.f32 %v558, %v573
        %v587 = vmul.f32 %v559, %v578
        %v588 = vmul.f32 %v560, %v583
        %v589 = vld [vmem:[%s1] sm:$0xff]
        %v590 = vld [vmem:[%s1 + $0x8] sm:$0xff]
        %v591 = vld [vmem:[%s1 + $0x10] sm:$0xff]
        %v592 = vld [vmem:[%s1 + $0x18] sm:$0xff]
        %597 = vrot.lane.b32.xlu0 %v589, 16
        %v598 = vpop.permute.xlu0 %597
        %599 = vrot.lane.b32.xlu0 %v590, 16
        %v600 = vpop.permute.xlu0 %599
        %601 = vrot.lane.b32.xlu0 %v591, 16
        %v602 = vpop.permute.xlu0 %601
        %603 = vrot.lane.b32.xlu0 %v592, 16
        %v604 = vpop.permute.xlu0 %603
        %vm609 = vcmask 130048
        %v610 = vsel %vm609, %v585, %v598
        %v611 = vsel %vm609, %v586, %v600
        %v612 = vsel %vm609, %v587, %v602
        %v613 = vsel %vm609, %v588, %v604
        %v614 = vld [vmem:[%s4] sm:$0xff]
        %v615 = vld [vmem:[%s4 + $0x8] sm:$0xff]
        %v616 = vld [vmem:[%s4 + $0x10] sm:$0xff]
        %v617 = vld [vmem:[%s4 + $0x18] sm:$0xff]
        %v618 = vld [vmem:[%s4 + $0x20] sm:$0xff]
        %v619 = vld [vmem:[%s4 + $0x28] sm:$0xff]
        %v620 = vld [vmem:[%s4 + $0x30] sm:$0x3f]
        %vm625 = vcmask 1040384
        %v626 = vrot.slane %v610, 7
        %v627 = vrot.slane %v611, 7
        %v628 = vsel %vm625, %v626, %v627
        %v629 = vrot.slane %v612, 7
        %v630 = vsel %vm625, %v627, %v629
        %v631 = vrot.slane %v613, 7
        %v632 = vsel %vm625, %v629, %v631
        %v635 = vsel %vm625, 0.0, %v626
        %v636 = vsel %vm625, %v631, 0.0
        %vm639 = vcmask 1046528
        %v640 = vrot.slane %v635, 1
        %v641 = vrot.slane %v628, 1
        %v642 = vsel %vm639, %v640, %v641
        %v643 = vrot.slane %v630, 1
        %v644 = vsel %vm639, %v641, %v643
        %v645 = vrot.slane %v632, 1
        %v646 = vsel %vm639, %v643, %v645
        %v647 = vrot.slane %v636, 1
        %v648 = vsel %vm639, %v645, %v647
        %vm652 = vcmask 1045504
        %v653 = vrot.slane %v616, 2
        %v654 = vrot.slane %v617, 2
        %v655 = vsel %vm652, %v653, %v654
        %v656 = vrot.slane %v618, 2
        %v657 = vsel %vm652, %v654, %v656
        %vm660 = vcmask 146432
        %v661 = vsel %vm660, %v642, 0
        %v663 = vsel %vm660, %v644, 0
        %v665 = vsel %vm660, %v646, 0
        %v667 = vsel %vm660, %v648, 0
        %vm669 = vcmask 1041408
        %v670 = vsel %vm669, %v656, 0
        %672 = vmatprep.subr.mxu0 0.0
        %673 = vmatpush1.msra.mxu0 0.0
        %674 = vmatprep.subr.mxu0 0.0
        %675 = vmatpush1.msra.mxu0 0.0
        %676 = vmatprep.subr.mxu0 0.0
        %677 = vmatpush1.msra.mxu0 0.0
        %678 = vmatprep.subr.mxu0 0.0
        %679 = vmatpush1.msra.mxu0 0.0
        %680 = vmatprep.subr.mxu0 0.0
        %681 = vmatpush1.msra.mxu0 0.0
        %682 = vmatprep.subr.mxu0 0.0
        %683 = vmatpush1.msra.mxu0 0.0
        %684 = vmatprep.subr.mxu0 0.0
        %685 = vmatpush1.msra.mxu0 0.0
        %686 = vmatprep.subr.mxu0 0.0
        %687 = vmatpush1.msra.mxu0 0.0
        %688 = vmatprep.subr.mxu0 0.0
        %689 = vmatpush1.msra.mxu0 0.0
        %690 = vmatprep.subr.mxu0 0.0
        %691 = vmatpush1.msra.mxu0 0.0
        %692 = vmatprep.subr.mxu0 0.0
        %693 = vmatpush1.msra.mxu0 0.0
        %694 = vmatprep.subr.mxu0 0.0
        %695 = vmatpush1.msra.mxu0 0.0
        %696 = vmatprep.subr.mxu0 0.0
        %697 = vmatpush1.msra.mxu0 0.0
        %698 = vmatprep.subr.mxu0 0.0
        %699 = vmatpush1.msra.mxu0 %v670
        %700 = vmatprep.subr.mxu0 0.0
        %701 = vmatpush1.msra.mxu0 %v657
        %702 = vmatprep.subr.mxu0 0.0
        %703 = vmatpush1.msra.mxu0 %v655
        %704 = vmatprep.subr.mxu0 0.0
        %705 = vmatpush2.msra.mxu0 0.0
        %706 = vmatprep.subr.mxu0 0.0
        %707 = vmatpush2.msra.mxu0 0.0
        %708 = vmatprep.subr.mxu0 0.0
        %709 = vmatpush2.msra.mxu0 0.0
        %710 = vmatprep.subr.mxu0 0.0
        %711 = vmatpush2.msra.mxu0 0.0
        %712 = vmatprep.subr.mxu0 0.0
        %713 = vmatpush2.msra.mxu0 0.0
        %714 = vmatprep.subr.mxu0 0.0
        %715 = vmatpush2.msra.mxu0 0.0
        %716 = vmatprep.subr.mxu0 0.0
        %717 = vmatpush2.msra.mxu0 0.0
        %718 = vmatprep.subr.mxu0 0.0
        %719 = vmatpush2.msra.mxu0 0.0
        %720 = vmatprep.subr.mxu0 0.0
        %721 = vmatpush2.msra.mxu0 0.0
        %722 = vmatprep.subr.mxu0 0.0
        %723 = vmatpush2.msra.mxu0 0.0
        %724 = vmatprep.subr.mxu0 0.0
        %725 = vmatpush2.msra.mxu0 0.0
        %726 = vmatprep.subr.mxu0 0.0
        %727 = vmatpush2.msra.mxu0 0.0
        %728 = vmatprep.subr.mxu0 0.0
        %729 = vmatpush2.msra.mxu0 0.0
        %730 = vmatprep.subr.mxu0 0.0
        %731 = vmatpush2.msra.mxu0 0.0
        %732 = vmatprep.subr.mxu0 0.0
        %733 = vmatpush2.msra.mxu0 0.0
        %734 = vmatprep.subr.mxu0 0.0
        %735 = vmatpush2.msra.mxu0 0.0
        %736 = vmatprep.mubr.f32.mxu0 0.0
        %737 = vmatmul.mubr.f32.gmra.mxu0 %v661
        %v738 = vpop.f32.mrf.mxu0
        %v739 = vadd.f32 0.0, %v738
        %v740 = vpop.f32.mrf.mxu0
        %741 = vmatprep.mubr.f32.mxu0 0.0
        %742 = vmatmul.mubr.f32.gmra.mxu0 %v663
        %v743 = vpop.f32.mrf.mxu0
        %v744 = vadd.f32 0.0, %v743
        %v745 = vpop.f32.mrf.mxu0
        %746 = vmatprep.mubr.f32.mxu0 0.0
        %747 = vmatmul.mubr.f32.gmra.mxu0 %v665
        %v748 = vpop.f32.mrf.mxu0
        %v749 = vadd.f32 0.0, %v748
        %v750 = vpop.f32.mrf.mxu0
        %751 = vmatprep.mubr.f32.mxu0 0.0
        %752 = vmatmul.mubr.f32.gmra.mxu0 %v667
        %v753 = vpop.f32.mrf.mxu0
        %v754 = vadd.f32 0.0, %v753
        %v755 = vpop.f32.mrf.mxu0
        %756 = vdwg.mxu0
        %v757 = vsel %vm660, %v635, 0
        %v759 = vsel %vm660, %v628, 0
        %v761 = vsel %vm660, %v630, 0
        %v763 = vsel %vm660, %v632, 0
        %v765 = vsel %vm669, %v616, 0
        %767 = vmatprep.subr.mxu0 0.0
        %768 = vmatpush1.msra.mxu0 0.0
        %769 = vmatprep.subr.mxu0 0.0
        %770 = vmatpush1.msra.mxu0 0.0
        %771 = vmatprep.subr.mxu0 0.0
        %772 = vmatpush1.msra.mxu0 0.0
        %773 = vmatprep.subr.mxu0 0.0
        %774 = vmatpush1.msra.mxu0 0.0
        %775 = vmatprep.subr.mxu0 0.0
        %776 = vmatpush1.msra.mxu0 0.0
        %777 = vmatprep.subr.mxu0 0.0
        %778 = vmatpush1.msra.mxu0 0.0
        %779 = vmatprep.subr.mxu0 0.0
        %780 = vmatpush1.msra.mxu0 0.0
        %781 = vmatprep.subr.mxu0 0.0
        %782 = vmatpush1.msra.mxu0 0.0
        %783 = vmatprep.subr.mxu0 0.0
        %784 = vmatpush1.msra.mxu0 0.0
        %785 = vmatprep.subr.mxu0 0.0
        %786 = vmatpush1.msra.mxu0 0.0
        %787 = vmatprep.subr.mxu0 0.0
        %788 = vmatpush1.msra.mxu0 0.0
        %789 = vmatprep.subr.mxu0 0.0
        %790 = vmatpush1.msra.mxu0 0.0
        %791 = vmatprep.subr.mxu0 0.0
        %792 = vmatpush1.msra.mxu0 0.0
        %793 = vmatprep.subr.mxu0 0.0
        %794 = vmatpush1.msra.mxu0 %v765
        %795 = vmatprep.subr.mxu0 0.0
        %796 = vmatpush1.msra.mxu0 %v615
        %797 = vmatprep.subr.mxu0 0.0
        %798 = vmatpush1.msra.mxu0 %v614
        %799 = vmatprep.subr.mxu0 0.0
        %800 = vmatpush2.msra.mxu0 0.0
        %801 = vmatprep.subr.mxu0 0.0
        %802 = vmatpush2.msra.mxu0 0.0
        %803 = vmatprep.subr.mxu0 0.0
        %804 = vmatpush2.msra.mxu0 0.0
        %805 = vmatprep.subr.mxu0 0.0
        %806 = vmatpush2.msra.mxu0 0.0
        %807 = vmatprep.subr.mxu0 0.0
        %808 = vmatpush2.msra.mxu0 0.0
        %809 = vmatprep.subr.mxu0 0.0
        %810 = vmatpush2.msra.mxu0 0.0
        %811 = vmatprep.subr.mxu0 0.0
        %812 = vmatpush2.msra.mxu0 0.0
        %813 = vmatprep.subr.mxu0 0.0
        %814 = vmatpush2.msra.mxu0 0.0
        %815 = vmatprep.subr.mxu0 0.0
        %816 = vmatpush2.msra.mxu0 0.0
        %817 = vmatprep.subr.mxu0 0.0
        %818 = vmatpush2.msra.mxu0 0.0
        %819 = vmatprep.subr.mxu0 0.0
        %820 = vmatpush2.msra.mxu0 0.0
        %821 = vmatprep.subr.mxu0 0.0
        %822 = vmatpush2.msra.mxu0 0.0
        %823 = vmatprep.subr.mxu0 0.0
        %824 = vmatpush2.msra.mxu0 0.0
        %825 = vmatprep.subr.mxu0 0.0
        %826 = vmatpush2.msra.mxu0 0.0
        %827 = vmatprep.subr.mxu0 0.0
        %828 = vmatpush2.msra.mxu0 0.0
        %829 = vmatprep.subr.mxu0 0.0
        %830 = vmatpush2.msra.mxu0 0.0
        %831 = vmatprep.mubr.f32.mxu0 0.0
        %832 = vmatmul.mubr.f32.gmra.mxu0 %v757
        %v833 = vpop.f32.mrf.mxu0
        %v834 = vadd.f32 %v739, %v833
        %v835 = vpop.f32.mrf.mxu0
        %836 = vmatprep.mubr.f32.mxu0 0.0
        %837 = vmatmul.mubr.f32.gmra.mxu0 %v759
        %v838 = vpop.f32.mrf.mxu0
        %v839 = vadd.f32 %v744, %v838
        %v840 = vpop.f32.mrf.mxu0
        %841 = vmatprep.mubr.f32.mxu0 0.0
        %842 = vmatmul.mubr.f32.gmra.mxu0 %v761
        %v843 = vpop.f32.mrf.mxu0
        %v844 = vadd.f32 %v749, %v843
        %v845 = vpop.f32.mrf.mxu0
        %846 = vmatprep.mubr.f32.mxu0 0.0
        %847 = vmatmul.mubr.f32.gmra.mxu0 %v763
        %v848 = vpop.f32.mrf.mxu0
        %v849 = vadd.f32 %v754, %v848
        %v850 = vpop.f32.mrf.mxu0
        %851 = vdwg.mxu0
        %v852 = vrot.slane %v635, 2
        %v853 = vrot.slane %v628, 2
        %v854 = vsel %vm652, %v852, %v853
        %v855 = vrot.slane %v630, 2
        %v856 = vsel %vm652, %v853, %v855
        %v857 = vrot.slane %v632, 2
        %v858 = vsel %vm652, %v855, %v857
        %v859 = vrot.slane %v636, 2
        %v860 = vsel %vm652, %v857, %v859
        %vm863 = vcmask 1043456
        %v864 = vrot.slane %v618, 4
        %v865 = vrot.slane %v619, 4
        %v866 = vsel %vm863, %v864, %v865
        %v867 = vrot.slane %v620, 4
        %v868 = vsel %vm863, %v865, %v867
        %v871 = vsel %vm660, %v854, 0
        %v873 = vsel %vm660, %v856, 0
        %v875 = vsel %vm660, %v858, 0
        %v877 = vsel %vm660, %v860, 0
        %v879 = vsel %vm669, %v867, 0
        %881 = vmatprep.subr.mxu0 0.0
        %882 = vmatpush1.msra.mxu0 0.0
        %883 = vmatprep.subr.mxu0 0.0
        %884 = vmatpush1.msra.mxu0 0.0
        %885 = vmatprep.subr.mxu0 0.0
        %886 = vmatpush1.msra.mxu0 0.0
        %887 = vmatprep.subr.mxu0 0.0
        %888 = vmatpush1.msra.mxu0 0.0
        %889 = vmatprep.subr.mxu0 0.0
        %890 = vmatpush1.msra.mxu0 0.0
        %891 = vmatprep.subr.mxu0 0.0
        %892 = vmatpush1.msra.mxu0 0.0
        %893 = vmatprep.subr.mxu0 0.0
        %894 = vmatpush1.msra.mxu0 0.0
        %895 = vmatprep.subr.mxu0 0.0
        %896 = vmatpush1.msra.mxu0 0.0
        %897 = vmatprep.subr.mxu0 0.0
        %898 = vmatpush1.msra.mxu0 0.0
        %899 = vmatprep.subr.mxu0 0.0
        %900 = vmatpush1.msra.mxu0 0.0
        %901 = vmatprep.subr.mxu0 0.0
        %902 = vmatpush1.msra.mxu0 0.0
        %903 = vmatprep.subr.mxu0 0.0
        %904 = vmatpush1.msra.mxu0 0.0
        %905 = vmatprep.subr.mxu0 0.0
        %906 = vmatpush1.msra.mxu0 0.0
        %907 = vmatprep.subr.mxu0 0.0
        %908 = vmatpush1.msra.mxu0 %v879
        %909 = vmatprep.subr.mxu0 0.0
        %910 = vmatpush1.msra.mxu0 %v868
        %911 = vmatprep.subr.mxu0 0.0
        %912 = vmatpush1.msra.mxu0 %v866
        %913 = vmatprep.subr.mxu0 0.0
        %914 = vmatpush2.msra.mxu0 0.0
        %915 = vmatprep.subr.mxu0 0.0
        %916 = vmatpush2.msra.mxu0 0.0
        %917 = vmatprep.subr.mxu0 0.0
        %918 = vmatpush2.msra.mxu0 0.0
        %919 = vmatprep.subr.mxu0 0.0
        %920 = vmatpush2.msra.mxu0 0.0
        %921 = vmatprep.subr.mxu0 0.0
        %922 = vmatpush2.msra.mxu0 0.0
        %923 = vmatprep.subr.mxu0 0.0
        %924 = vmatpush2.msra.mxu0 0.0
        %925 = vmatprep.subr.mxu0 0.0
        %926 = vmatpush2.msra.mxu0 0.0
        %927 = vmatprep.subr.mxu0 0.0
        %928 = vmatpush2.msra.mxu0 0.0
        %929 = vmatprep.subr.mxu0 0.0
        %930 = vmatpush2.msra.mxu0 0.0
        %931 = vmatprep.subr.mxu0 0.0
        %932 = vmatpush2.msra.mxu0 0.0
        %933 = vmatprep.subr.mxu0 0.0
        %934 = vmatpush2.msra.mxu0 0.0
        %935 = vmatprep.subr.mxu0 0.0
        %936 = vmatpush2.msra.mxu0 0.0
        %937 = vmatprep.subr.mxu0 0.0
        %938 = vmatpush2.msra.mxu0 0.0
        %939 = vmatprep.subr.mxu0 0.0
        %940 = vmatpush2.msra.mxu0 0.0
        %941 = vmatprep.subr.mxu0 0.0
        %942 = vmatpush2.msra.mxu0 0.0
        %943 = vmatprep.subr.mxu0 0.0
        %944 = vmatpush2.msra.mxu0 0.0
        %945 = vmatprep.mubr.f32.mxu0 0.0
        %946 = vmatmul.mubr.f32.gmra.mxu0 %v871
        %v947 = vpop.f32.mrf.mxu0
        %v948 = vadd.f32 0.0, %v947
        %v949 = vpop.f32.mrf.mxu0
        %950 = vmatprep.mubr.f32.mxu0 0.0
        %951 = vmatmul.mubr.f32.gmra.mxu0 %v873
        %v952 = vpop.f32.mrf.mxu0
        %v953 = vadd.f32 0.0, %v952
        %v954 = vpop.f32.mrf.mxu0
        %955 = vmatprep.mubr.f32.mxu0 0.0
        %956 = vmatmul.mubr.f32.gmra.mxu0 %v875
        %v957 = vpop.f32.mrf.mxu0
        %v958 = vadd.f32 0.0, %v957
        %v959 = vpop.f32.mrf.mxu0
        %960 = vmatprep.mubr.f32.mxu0 0.0
        %961 = vmatmul.mubr.f32.gmra.mxu0 %v877
        %v962 = vpop.f32.mrf.mxu0
        %v963 = vadd.f32 0.0, %v962
        %v964 = vpop.f32.mrf.mxu0
        %965 = vdwg.mxu0
        %v966 = vadd.f32 %v834, %v948
        %v967 = vadd.f32 %v839, %v953
        %v968 = vadd.f32 %v844, %v958
        %v969 = vadd.f32 %v849, %v963
        %v970 = vld [vmem:[%s5] sm:$0x1]
        %v972 = vlaneseq
        %v973 = vshrl.u32 %v972, 7
        %v974 = vsub.s32 0, %v973
        %v975 = vrot.slane %v970, %v974
        %v977 = vadd.f32 %v966, %v975
        %v978 = vadd.f32 %v967, %v975
        %v979 = vadd.f32 %v968, %v975
        %v980 = vadd.f32 %v969, %v975
        %vm981 = vcmp.ge.f32.partialorder %v977, 0.0
        %vm982 = vcmp.ge.f32.partialorder %v978, 0.0
        %vm983 = vcmp.ge.f32.partialorder %v979, 0.0
        %vm984 = vcmp.ge.f32.partialorder %v980, 0.0
        %v985 = vmul.f32 %v977, 0.3
        %v986 = vmul.f32 %v978, 0.3
        %v987 = vmul.f32 %v979, 0.3
        %v988 = vmul.f32 %v980, 0.3
        %v989 = vsel %vm981, %v977, %v985
        %v990 = vsel %vm982, %v978, %v986
        %v991 = vsel %vm983, %v979, %v987
        %v992 = vsel %vm984, %v980, %v988
        %vm993 = vcmask 64512
        %v994 = vsel %vm993, %v989, 0.0
        %v995 = vsel %vm993, %v990, 0.0
        %v996 = vadd.f32 %v994, %v995
        %v997 = vsel %vm993, %v991, 0.0
        %v998 = vadd.f32 %v996, %v997
        %v999 = vsel %vm993, %v992, 0.0
        %v1000 = vadd.f32 %v998, %v999
        %v1001 = vrot.slane %v1000, 4
        %v1002 = vadd.f32 %v1000, %v1001
        %v1003 = vrot.slane %v1002, 2
        %v1004 = vadd.f32 %v1002, %v1003
        %v1005 = vrot.slane %v1004, 1
        %v1006 = vadd.f32 %v1004, %v1005
        %v1007 = vrcp.pop 32.0
        %v1008 = vmul.f32 %v1006, %v1007
        %v1009 = vsub.f32 %v989, %v1008
        %v1010 = vsub.f32 %v990, %v1008
        %v1011 = vsub.f32 %v991, %v1008
        %v1012 = vsub.f32 %v992, %v1008
        %v1013 = vmul.f32 %v1009, %v1009
        %v1014 = vmul.f32 %v1010, %v1010
        %v1015 = vmul.f32 %v1011, %v1011
        %v1016 = vmul.f32 %v1012, %v1012
        %v1017 = vsel %vm993, %v1013, 0.0
        %v1018 = vsel %vm993, %v1014, 0.0
        %v1019 = vadd.f32 %v1017, %v1018
        %v1020 = vsel %vm993, %v1015, 0.0
        %v1021 = vadd.f32 %v1019, %v1020
        %v1022 = vsel %vm993, %v1016, 0.0
        %v1023 = vadd.f32 %v1021, %v1022
        %v1024 = vrot.slane %v1023, 4
        %v1025 = vadd.f32 %v1023, %v1024
        %v1026 = vrot.slane %v1025, 2
        %v1027 = vadd.f32 %v1025, %v1026
        %v1028 = vrot.slane %v1027, 1
        %v1029 = vadd.f32 %v1027, %v1028
        %v1030 = vmul.f32 %v1029, %v1007
        %v1031 = vadd.f32 %v1030, 1e-05
        %v1032 = vrsqrt.pop %v1031
        %v1033 = vmul.f32 %v1009, %v1032
        %v1034 = vmul.f32 %v1010, %v1032
        %v1035 = vmul.f32 %v1011, %v1032
        %v1036 = vmul.f32 %v1012, %v1032
        %v1037 = vld [vmem:[%s6] sm:$0x1]
        %v1039 = vlaneseq
        %v1040 = vshrl.u32 %v1039, 7
        %v1041 = vsub.s32 0, %v1040
        %v1042 = vrot.slane %v1037, %v1041
        %v1044 = vmul.f32 %v1033, %v1042
        %v1045 = vmul.f32 %v1034, %v1042
        %v1046 = vmul.f32 %v1035, %v1042
        %v1047 = vmul.f32 %v1036, %v1042
        %v1048 = vld [vmem:[%s7] sm:$0x1]
        %v1050 = vlaneseq
        %v1051 = vshrl.u32 %v1050, 7
        %v1052 = vsub.s32 0, %v1051
        %v1053 = vrot.slane %v1048, %v1052
        %v1055 = vadd.f32 %v1044, %v1053
        %v1056 = vadd.f32 %v1045, %v1053
        %v1057 = vadd.f32 %v1046, %v1053
        %v1058 = vadd.f32 %v1047, %v1053
        %v1059 = vld [vmem:[%s8] sm:$0xff]
        %v1060 = vld [vmem:[%s8 + $0x8] sm:$0xff]
        %v1061 = vld [vmem:[%s8 + $0x10] sm:$0xff]
        %v1066 = vrot.slane %v1055, 7
        %v1067 = vrot.slane %v1056, 7
        %v1068 = vsel %vm625, %v1066, %v1067
        %v1069 = vrot.slane %v1057, 7
        %v1070 = vsel %vm625, %v1067, %v1069
        %v1071 = vrot.slane %v1058, 7
        %v1072 = vsel %vm625, %v1069, %v1071
        %v1075 = vsel %vm625, 0.0, %v1066
        %v1076 = vsel %vm625, %v1071, 0.0
        %v1079 = vrot.slane %v1075, 1
        %v1080 = vrot.slane %v1068, 1
        %v1081 = vsel %vm639, %v1079, %v1080
        %v1082 = vrot.slane %v1070, 1
        %v1083 = vsel %vm639, %v1080, %v1082
        %v1084 = vrot.slane %v1072, 1
        %v1085 = vsel %vm639, %v1082, %v1084
        %v1086 = vrot.slane %v1076, 1
        %v1087 = vsel %vm639, %v1084, %v1086
        %v1088 = vsel %vm993, %v1081, 0
        %v1090 = vsel %vm993, %v1083, 0
        %v1092 = vsel %vm993, %v1085, 0
        %v1094 = vsel %vm993, %v1087, 0
        %1096 = vmatprep.subr.mxu0 0.0
        %1097 = vmatpush1.msra.mxu0 0.0
        %1098 = vmatprep.subr.mxu0 0.0
        %1099 = vmatpush1.msra.mxu0 0.0
        %1100 = vmatprep.subr.mxu0 0.0
        %1101 = vmatpush1.msra.mxu0 0.0
        %1102 = vmatprep.subr.mxu0 0.0
        %1103 = vmatpush1.msra.mxu0 0.0
        %1104 = vmatprep.subr.mxu0 0.0
        %1105 = vmatpush1.msra.mxu0 0.0
        %1106 = vmatprep.subr.mxu0 0.0
        %1107 = vmatpush1.msra.mxu0 0.0
        %1108 = vmatprep.subr.mxu0 0.0
        %1109 = vmatpush1.msra.mxu0 0.0
        %1110 = vmatprep.subr.mxu0 0.0
        %1111 = vmatpush1.msra.mxu0 0.0
        %1112 = vmatprep.subr.mxu0 0.0
        %1113 = vmatpush1.msra.mxu0 0.0
        %1114 = vmatprep.subr.mxu0 0.0
        %1115 = vmatpush1.msra.mxu0 0.0
        %1116 = vmatprep.subr.mxu0 0.0
        %1117 = vmatpush1.msra.mxu0 0.0
        %1118 = vmatprep.subr.mxu0 0.0
        %1119 = vmatpush1.msra.mxu0 0.0
        %1120 = vmatprep.subr.mxu0 0.0
        %1121 = vmatpush1.msra.mxu0 0.0
        %1122 = vmatprep.subr.mxu0 0.0
        %1123 = vmatpush1.msra.mxu0 0.0
        %1124 = vmatprep.subr.mxu0 0.0
        %1125 = vmatpush1.msra.mxu0 0.0
        %1126 = vmatprep.subr.mxu0 0.0
        %1127 = vmatpush1.msra.mxu0 %v1060
        %1128 = vmatprep.subr.mxu0 0.0
        %1129 = vmatpush2.msra.mxu0 0.0
        %1130 = vmatprep.subr.mxu0 0.0
        %1131 = vmatpush2.msra.mxu0 0.0
        %1132 = vmatprep.subr.mxu0 0.0
        %1133 = vmatpush2.msra.mxu0 0.0
        %1134 = vmatprep.subr.mxu0 0.0
        %1135 = vmatpush2.msra.mxu0 0.0
        %1136 = vmatprep.subr.mxu0 0.0
        %1137 = vmatpush2.msra.mxu0 0.0
        %1138 = vmatprep.subr.mxu0 0.0
        %1139 = vmatpush2.msra.mxu0 0.0
        %1140 = vmatprep.subr.mxu0 0.0
        %1141 = vmatpush2.msra.mxu0 0.0
        %1142 = vmatprep.subr.mxu0 0.0
        %1143 = vmatpush2.msra.mxu0 0.0
        %1144 = vmatprep.subr.mxu0 0.0
        %1145 = vmatpush2.msra.mxu0 0.0
        %1146 = vmatprep.subr.mxu0 0.0
        %1147 = vmatpush2.msra.mxu0 0.0
        %1148 = vmatprep.subr.mxu0 0.0
        %1149 = vmatpush2.msra.mxu0 0.0
        %1150 = vmatprep.subr.mxu0 0.0
        %1151 = vmatpush2.msra.mxu0 0.0
        %1152 = vmatprep.subr.mxu0 0.0
        %1153 = vmatpush2.msra.mxu0 0.0
        %1154 = vmatprep.subr.mxu0 0.0
        %1155 = vmatpush2.msra.mxu0 0.0
        %1156 = vmatprep.subr.mxu0 0.0
        %1157 = vmatpush2.msra.mxu0 0.0
        %1158 = vmatprep.subr.mxu0 0.0
        %1159 = vmatpush2.msra.mxu0 0.0
        %1160 = vmatprep.mubr.f32.mxu0 0.0
        %1161 = vmatmul.mubr.f32.gmra.mxu0 %v1088
        %v1162 = vpop.f32.mrf.mxu0
        %v1163 = vadd.f32 0.0, %v1162
        %v1164 = vpop.f32.mrf.mxu0
        %1165 = vmatprep.mubr.f32.mxu0 0.0
        %1166 = vmatmul.mubr.f32.gmra.mxu0 %v1090
        %v1167 = vpop.f32.mrf.mxu0
        %v1168 = vadd.f32 0.0, %v1167
        %v1169 = vpop.f32.mrf.mxu0
        %1170 = vmatprep.mubr.f32.mxu0 0.0
        %1171 = vmatmul.mubr.f32.gmra.mxu0 %v1092
        %v1172 = vpop.f32.mrf.mxu0
        %v1173 = vadd.f32 0.0, %v1172
        %v1174 = vpop.f32.mrf.mxu0
        %1175 = vmatprep.mubr.f32.mxu0 0.0
        %1176 = vmatmul.mubr.f32.gmra.mxu0 %v1094
        %v1177 = vpop.f32.mrf.mxu0
        %v1178 = vadd.f32 0.0, %v1177
        %v1179 = vpop.f32.mrf.mxu0
        %1180 = vdwg.mxu0
        %v1181 = vsel %vm993, %v1075, 0
        %v1183 = vsel %vm993, %v1068, 0
        %v1185 = vsel %vm993, %v1070, 0
        %v1187 = vsel %vm993, %v1072, 0
        %1189 = vmatprep.subr.mxu0 0.0
        %1190 = vmatpush1.msra.mxu0 0.0
        %1191 = vmatprep.subr.mxu0 0.0
        %1192 = vmatpush1.msra.mxu0 0.0
        %1193 = vmatprep.subr.mxu0 0.0
        %1194 = vmatpush1.msra.mxu0 0.0
        %1195 = vmatprep.subr.mxu0 0.0
        %1196 = vmatpush1.msra.mxu0 0.0
        %1197 = vmatprep.subr.mxu0 0.0
        %1198 = vmatpush1.msra.mxu0 0.0
        %1199 = vmatprep.subr.mxu0 0.0
        %1200 = vmatpush1.msra.mxu0 0.0
        %1201 = vmatprep.subr.mxu0 0.0
        %1202 = vmatpush1.msra.mxu0 0.0
        %1203 = vmatprep.subr.mxu0 0.0
        %1204 = vmatpush1.msra.mxu0 0.0
        %1205 = vmatprep.subr.mxu0 0.0
        %1206 = vmatpush1.msra.mxu0 0.0
        %1207 = vmatprep.subr.mxu0 0.0
        %1208 = vmatpush1.msra.mxu0 0.0
        %1209 = vmatprep.subr.mxu0 0.0
        %1210 = vmatpush1.msra.mxu0 0.0
        %1211 = vmatprep.subr.mxu0 0.0
        %1212 = vmatpush1.msra.mxu0 0.0
        %1213 = vmatprep.subr.mxu0 0.0
        %1214 = vmatpush1.msra.mxu0 0.0
        %1215 = vmatprep.subr.mxu0 0.0
        %1216 = vmatpush1.msra.mxu0 0.0
        %1217 = vmatprep.subr.mxu0 0.0
        %1218 = vmatpush1.msra.mxu0 0.0
        %1219 = vmatprep.subr.mxu0 0.0
        %1220 = vmatpush1.msra.mxu0 %v1059
        %1221 = vmatprep.subr.mxu0 0.0
        %1222 = vmatpush2.msra.mxu0 0.0
        %1223 = vmatprep.subr.mxu0 0.0
        %1224 = vmatpush2.msra.mxu0 0.0
        %1225 = vmatprep.subr.mxu0 0.0
        %1226 = vmatpush2.msra.mxu0 0.0
        %1227 = vmatprep.subr.mxu0 0.0
        %1228 = vmatpush2.msra.mxu0 0.0
        %1229 = vmatprep.subr.mxu0 0.0
        %1230 = vmatpush2.msra.mxu0 0.0
        %1231 = vmatprep.subr.mxu0 0.0
        %1232 = vmatpush2.msra.mxu0 0.0
        %1233 = vmatprep.subr.mxu0 0.0
        %1234 = vmatpush2.msra.mxu0 0.0
        %1235 = vmatprep.subr.mxu0 0.0
        %1236 = vmatpush2.msra.mxu0 0.0
        %1237 = vmatprep.subr.mxu0 0.0
        %1238 = vmatpush2.msra.mxu0 0.0
        %1239 = vmatprep.subr.mxu0 0.0
        %1240 = vmatpush2.msra.mxu0 0.0
        %1241 = vmatprep.subr.mxu0 0.0
        %1242 = vmatpush2.msra.mxu0 0.0
        %1243 = vmatprep.subr.mxu0 0.0
        %1244 = vmatpush2.msra.mxu0 0.0
        %1245 = vmatprep.subr.mxu0 0.0
        %1246 = vmatpush2.msra.mxu0 0.0
        %1247 = vmatprep.subr.mxu0 0.0
        %1248 = vmatpush2.msra.mxu0 0.0
        %1249 = vmatprep.subr.mxu0 0.0
        %1250 = vmatpush2.msra.mxu0 0.0
        %1251 = vmatprep.subr.mxu0 0.0
        %1252 = vmatpush2.msra.mxu0 0.0
        %1253 = vmatprep.mubr.f32.mxu0 0.0
        %1254 = vmatmul.mubr.f32.gmra.mxu0 %v1181
        %v1255 = vpop.f32.mrf.mxu0
        %v1256 = vadd.f32 %v1163, %v1255
        %v1257 = vpop.f32.mrf.mxu0
        %1258 = vmatprep.mubr.f32.mxu0 0.0
        %1259 = vmatmul.mubr.f32.gmra.mxu0 %v1183
        %v1260 = vpop.f32.mrf.mxu0
        %v1261 = vadd.f32 %v1168, %v1260
        %v1262 = vpop.f32.mrf.mxu0
        %1263 = vmatprep.mubr.f32.mxu0 0.0
        %1264 = vmatmul.mubr.f32.gmra.mxu0 %v1185
        %v1265 = vpop.f32.mrf.mxu0
        %v1266 = vadd.f32 %v1173, %v1265
        %v1267 = vpop.f32.mrf.mxu0
        %1268 = vmatprep.mubr.f32.mxu0 0.0
        %1269 = vmatmul.mubr.f32.gmra.mxu0 %v1187
        %v1270 = vpop.f32.mrf.mxu0
        %v1271 = vadd.f32 %v1178, %v1270
        %v1272 = vpop.f32.mrf.mxu0
        %1273 = vdwg.mxu0
        %v1274 = vrot.slane %v1075, 2
        %v1275 = vrot.slane %v1068, 2
        %v1276 = vsel %vm652, %v1274, %v1275
        %v1277 = vrot.slane %v1070, 2
        %v1278 = vsel %vm652, %v1275, %v1277
        %v1279 = vrot.slane %v1072, 2
        %v1280 = vsel %vm652, %v1277, %v1279
        %v1281 = vrot.slane %v1076, 2
        %v1282 = vsel %vm652, %v1279, %v1281
        %v1283 = vsel %vm993, %v1276, 0
        %v1285 = vsel %vm993, %v1278, 0
        %v1287 = vsel %vm993, %v1280, 0
        %v1289 = vsel %vm993, %v1282, 0
        %1291 = vmatprep.subr.mxu0 0.0
        %1292 = vmatpush1.msra.mxu0 0.0
        %1293 = vmatprep.subr.mxu0 0.0
        %1294 = vmatpush1.msra.mxu0 0.0
        %1295 = vmatprep.subr.mxu0 0.0
        %1296 = vmatpush1.msra.mxu0 0.0
        %1297 = vmatprep.subr.mxu0 0.0
        %1298 = vmatpush1.msra.mxu0 0.0
        %1299 = vmatprep.subr.mxu0 0.0
        %1300 = vmatpush1.msra.mxu0 0.0
        %1301 = vmatprep.subr.mxu0 0.0
        %1302 = vmatpush1.msra.mxu0 0.0
        %1303 = vmatprep.subr.mxu0 0.0
        %1304 = vmatpush1.msra.mxu0 0.0
        %1305 = vmatprep.subr.mxu0 0.0
        %1306 = vmatpush1.msra.mxu0 0.0
        %1307 = vmatprep.subr.mxu0 0.0
        %1308 = vmatpush1.msra.mxu0 0.0
        %1309 = vmatprep.subr.mxu0 0.0
        %1310 = vmatpush1.msra.mxu0 0.0
        %1311 = vmatprep.subr.mxu0 0.0
        %1312 = vmatpush1.msra.mxu0 0.0
        %1313 = vmatprep.subr.mxu0 0.0
        %1314 = vmatpush1.msra.mxu0 0.0
        %1315 = vmatprep.subr.mxu0 0.0
        %1316 = vmatpush1.msra.mxu0 0.0
        %1317 = vmatprep.subr.mxu0 0.0
        %1318 = vmatpush1.msra.mxu0 0.0
        %1319 = vmatprep.subr.mxu0 0.0
        %1320 = vmatpush1.msra.mxu0 0.0
        %1321 = vmatprep.subr.mxu0 0.0
        %1322 = vmatpush1.msra.mxu0 %v1061
        %1323 = vmatprep.subr.mxu0 0.0
        %1324 = vmatpush2.msra.mxu0 0.0
        %1325 = vmatprep.subr.mxu0 0.0
        %1326 = vmatpush2.msra.mxu0 0.0
        %1327 = vmatprep.subr.mxu0 0.0
        %1328 = vmatpush2.msra.mxu0 0.0
        %1329 = vmatprep.subr.mxu0 0.0
        %1330 = vmatpush2.msra.mxu0 0.0
        %1331 = vmatprep.subr.mxu0 0.0
        %1332 = vmatpush2.msra.mxu0 0.0
        %1333 = vmatprep.subr.mxu0 0.0
        %1334 = vmatpush2.msra.mxu0 0.0
        %1335 = vmatprep.subr.mxu0 0.0
        %1336 = vmatpush2.msra.mxu0 0.0
        %1337 = vmatprep.subr.mxu0 0.0
        %1338 = vmatpush2.msra.mxu0 0.0
        %1339 = vmatprep.subr.mxu0 0.0
        %1340 = vmatpush2.msra.mxu0 0.0
        %1341 = vmatprep.subr.mxu0 0.0
        %1342 = vmatpush2.msra.mxu0 0.0
        %1343 = vmatprep.subr.mxu0 0.0
        %1344 = vmatpush2.msra.mxu0 0.0
        %1345 = vmatprep.subr.mxu0 0.0
        %1346 = vmatpush2.msra.mxu0 0.0
        %1347 = vmatprep.subr.mxu0 0.0
        %1348 = vmatpush2.msra.mxu0 0.0
        %1349 = vmatprep.subr.mxu0 0.0
        %1350 = vmatpush2.msra.mxu0 0.0
        %1351 = vmatprep.subr.mxu0 0.0
        %1352 = vmatpush2.msra.mxu0 0.0
        %1353 = vmatprep.subr.mxu0 0.0
        %1354 = vmatpush2.msra.mxu0 0.0
        %1355 = vmatprep.mubr.f32.mxu0 0.0
        %1356 = vmatmul.mubr.f32.gmra.mxu0 %v1283
        %v1357 = vpop.f32.mrf.mxu0
        %v1358 = vadd.f32 0.0, %v1357
        %v1359 = vpop.f32.mrf.mxu0
        %1360 = vmatprep.mubr.f32.mxu0 0.0
        %1361 = vmatmul.mubr.f32.gmra.mxu0 %v1285
        %v1362 = vpop.f32.mrf.mxu0
        %v1363 = vadd.f32 0.0, %v1362
        %v1364 = vpop.f32.mrf.mxu0
        %1365 = vmatprep.mubr.f32.mxu0 0.0
        %1366 = vmatmul.mubr.f32.gmra.mxu0 %v1287
        %v1367 = vpop.f32.mrf.mxu0
        %v1368 = vadd.f32 0.0, %v1367
        %v1369 = vpop.f32.mrf.mxu0
        %1370 = vmatprep.mubr.f32.mxu0 0.0
        %1371 = vmatmul.mubr.f32.gmra.mxu0 %v1289
        %v1372 = vpop.f32.mrf.mxu0
        %v1373 = vadd.f32 0.0, %v1372
        %v1374 = vpop.f32.mrf.mxu0
        %1375 = vdwg.mxu0
        %v1376 = vadd.f32 %v1256, %v1358
        %v1377 = vadd.f32 %v1261, %v1363
        %v1378 = vadd.f32 %v1266, %v1368
        %v1379 = vadd.f32 %v1271, %v1373
        %v1380 = vld [vmem:[%s9] sm:$0x1]
        %v1382 = vlaneseq
        %v1383 = vshrl.u32 %v1382, 7
        %v1384 = vsub.s32 0, %v1383
        %v1385 = vrot.slane %v1380, %v1384
        %v1387 = vadd.f32 %v1376, %v1385
        %v1388 = vadd.f32 %v1377, %v1385
        %v1389 = vadd.f32 %v1378, %v1385
        %v1390 = vadd.f32 %v1379, %v1385
        %v1391 = vlaneseq
        %v1392 = vand.u32 %v1391, 127
        %v1393 = vlaneseq
        %v1394 = vshrl.u32 %v1393, 7
        %v1395 = vadd.s32 %v1394, 8
        %v1396 = vmul.u32 %v1394, 2
        %v1397 = vmul.u32 %v1395, 2
        %vm1398 = vcmp.eq.s32.totalorder %v1392, %v1396
        %vm1399 = vcmp.eq.s32.totalorder %v1392, %v1397
        %v1400 = vsel %vm1398, 1.0, 0.0
        %v1401 = vsel %vm1399, 1.0, 0.0
        %vm1402 = vcmask 261120
        %v1404 = vsel %vm1402, %v1400, 0
        %v1407 = vsel %vm1402, %v1401, 0
        %1409 = vmatprep.subr.mxu0 0.0
        %1410 = vmatpush1.msra.mxu0 0.0
        %1411 = vmatprep.subr.mxu0 0.0
        %1412 = vmatpush1.msra.mxu0 0.0
        %1413 = vmatprep.subr.mxu0 0.0
        %1414 = vmatpush1.msra.mxu0 0.0
        %1415 = vmatprep.subr.mxu0 0.0
        %1416 = vmatpush1.msra.mxu0 0.0
        %1417 = vmatprep.subr.mxu0 0.0
        %1418 = vmatpush1.msra.mxu0 0.0
        %1419 = vmatprep.subr.mxu0 0.0
        %1420 = vmatpush1.msra.mxu0 0.0
        %1421 = vmatprep.subr.mxu0 0.0
        %1422 = vmatpush1.msra.mxu0 0.0
        %1423 = vmatprep.subr.mxu0 0.0
        %1424 = vmatpush1.msra.mxu0 0.0
        %1425 = vmatprep.subr.mxu0 0.0
        %1426 = vmatpush1.msra.mxu0 0.0
        %1427 = vmatprep.subr.mxu0 0.0
        %1428 = vmatpush1.msra.mxu0 0.0
        %1429 = vmatprep.subr.mxu0 0.0
        %1430 = vmatpush1.msra.mxu0 0.0
        %1431 = vmatprep.subr.mxu0 0.0
        %1432 = vmatpush1.msra.mxu0 0.0
        %1433 = vmatprep.subr.mxu0 0.0
        %1434 = vmatpush1.msra.mxu0 %v1390
        %1435 = vmatprep.subr.mxu0 0.0
        %1436 = vmatpush1.msra.mxu0 %v1389
        %1437 = vmatprep.subr.mxu0 0.0
        %1438 = vmatpush1.msra.mxu0 %v1388
        %1439 = vmatprep.subr.mxu0 0.0
        %1440 = vmatpush1.msra.mxu0 %v1387
        %1441 = vmatprep.subr.mxu0 0.0
        %1442 = vmatpush2.msra.mxu0 0.0
        %1443 = vmatprep.subr.mxu0 0.0
        %1444 = vmatpush2.msra.mxu0 0.0
        %1445 = vmatprep.subr.mxu0 0.0
        %1446 = vmatpush2.msra.mxu0 0.0
        %1447 = vmatprep.subr.mxu0 0.0
        %1448 = vmatpush2.msra.mxu0 0.0
        %1449 = vmatprep.subr.mxu0 0.0
        %1450 = vmatpush2.msra.mxu0 0.0
        %1451 = vmatprep.subr.mxu0 0.0
        %1452 = vmatpush2.msra.mxu0 0.0
        %1453 = vmatprep.subr.mxu0 0.0
        %1454 = vmatpush2.msra.mxu0 0.0
        %1455 = vmatprep.subr.mxu0 0.0
        %1456 = vmatpush2.msra.mxu0 0.0
        %1457 = vmatprep.subr.mxu0 0.0
        %1458 = vmatpush2.msra.mxu0 0.0
        %1459 = vmatprep.subr.mxu0 0.0
        %1460 = vmatpush2.msra.mxu0 0.0
        %1461 = vmatprep.subr.mxu0 0.0
        %1462 = vmatpush2.msra.mxu0 0.0
        %1463 = vmatprep.subr.mxu0 0.0
        %1464 = vmatpush2.msra.mxu0 0.0
        %1465 = vmatprep.subr.mxu0 0.0
        %1466 = vmatpush2.msra.mxu0 0.0
        %1467 = vmatprep.subr.mxu0 0.0
        %1468 = vmatpush2.msra.mxu0 0.0
        %1469 = vmatprep.subr.mxu0 0.0
        %1470 = vmatpush2.msra.mxu0 0.0
        %1471 = vmatprep.subr.mxu0 0.0
        %1472 = vmatpush2.msra.mxu0 0.0
        %1473 = vmatprep.mubr.f32.mxu0 0.0
        %1474 = vmatmul.mubr.f32.gmra.mxu0 %v1404
        %v1475 = vpop.f32.mrf.mxu0
        %v1476 = vadd.f32 0.0, %v1475
        %v1477 = vpop.f32.mrf.mxu0
        %1478 = vmatprep.mubr.f32.mxu0 0.0
        %1479 = vmatmul.mubr.f32.gmra.mxu0 %v1407
        %v1480 = vpop.f32.mrf.mxu0
        %v1481 = vadd.f32 0.0, %v1480
        %v1482 = vpop.f32.mrf.mxu0
        %1483 = vdwg.mxu0
        %vm1484 = vcmp.ge.f32.partialorder %v1476, 0.0
        %vm1485 = vcmp.ge.f32.partialorder %v1481, 0.0
        %v1486 = vmul.f32 %v1476, 0.3
        %v1487 = vmul.f32 %v1481, 0.3
        %v1488 = vsel %vm1484, %v1476, %v1486
        %v1489 = vsel %vm1485, %v1481, %v1487
        %v1490 = vsel %vm993, %v1488, 0.0
        %v1491 = vsel %vm993, %v1489, 0.0
        %v1492 = vadd.f32 %v1490, %v1491
        %v1493 = vrot.slane %v1492, 4
        %v1494 = vadd.f32 %v1492, %v1493
        %v1495 = vrot.slane %v1494, 2
        %v1496 = vadd.f32 %v1494, %v1495
        %v1497 = vrot.slane %v1496, 1
        %v1498 = vadd.f32 %v1496, %v1497
        %v1499 = vrcp.pop 16.0
        %v1500 = vmul.f32 %v1498, %v1499
        %v1501 = vsub.f32 %v1488, %v1500
        %v1502 = vsub.f32 %v1489, %v1500
        %v1503 = vmul.f32 %v1501, %v1501
        %v1504 = vmul.f32 %v1502, %v1502
        %v1505 = vsel %vm993, %v1503, 0.0
        %v1506 = vsel %vm993, %v1504, 0.0
        %v1507 = vadd.f32 %v1505, %v1506
        %v1508 = vrot.slane %v1507, 4
        %v1509 = vadd.f32 %v1507, %v1508
        %v1510 = vrot.slane %v1509, 2
        %v1511 = vadd.f32 %v1509, %v1510
        %v1512 = vrot.slane %v1511, 1
        %v1513 = vadd.f32 %v1511, %v1512
        %v1514 = vmul.f32 %v1513, %v1499
        %v1515 = vadd.f32 %v1514, 1e-05
        %v1516 = vrsqrt.pop %v1515
        %v1517 = vmul.f32 %v1501, %v1516
        %v1518 = vmul.f32 %v1502, %v1516
        %v1519 = vld [vmem:[%s10] sm:$0x1]
        %v1521 = vlaneseq
        %v1522 = vshrl.u32 %v1521, 7
        %v1523 = vsub.s32 0, %v1522
        %v1524 = vrot.slane %v1519, %v1523
        %v1526 = vmul.f32 %v1517, %v1524
        %v1527 = vmul.f32 %v1518, %v1524
        %v1528 = vld [vmem:[%s11] sm:$0x1]
        %v1530 = vlaneseq
        %v1531 = vshrl.u32 %v1530, 7
        %v1532 = vsub.s32 0, %v1531
        %v1533 = vrot.slane %v1528, %v1532
        %v1535 = vadd.f32 %v1526, %v1533
        %v1536 = vadd.f32 %v1527, %v1533
        %v1537 = vld [vmem:[%s12] sm:$0xff]
        %v1538 = vld [vmem:[%s12 + $0x8] sm:$0xff]
        %v1539 = vld [vmem:[%s12 + $0x10] sm:$0xff]
        %v1542 = vrot.slane %v1535, 7
        %v1543 = vrot.slane %v1536, 7
        %v1544 = vsel %vm625, %v1542, %v1543
        %v1547 = vsel %vm625, 0.0, %v1542
        %v1548 = vsel %vm625, %v1543, 0.0
        %v1551 = vrot.slane %v1547, 1
        %v1552 = vrot.slane %v1544, 1
        %v1553 = vsel %vm639, %v1551, %v1552
        %v1554 = vrot.slane %v1548, 1
        %v1555 = vsel %vm639, %v1552, %v1554
        %v1556 = vsel %vm993, %v1553, 0
        %v1558 = vsel %vm993, %v1555, 0
        %1560 = vmatprep.subr.mxu0 0.0
        %1561 = vmatpush1.msra.mxu0 0.0
        %1562 = vmatprep.subr.mxu0 0.0
        %1563 = vmatpush1.msra.mxu0 0.0
        %1564 = vmatprep.subr.mxu0 0.0
        %1565 = vmatpush1.msra.mxu0 0.0
        %1566 = vmatprep.subr.mxu0 0.0
        %1567 = vmatpush1.msra.mxu0 0.0
        %1568 = vmatprep.subr.mxu0 0.0
        %1569 = vmatpush1.msra.mxu0 0.0
        %1570 = vmatprep.subr.mxu0 0.0
        %1571 = vmatpush1.msra.mxu0 0.0
        %1572 = vmatprep.subr.mxu0 0.0
        %1573 = vmatpush1.msra.mxu0 0.0
        %1574 = vmatprep.subr.mxu0 0.0
        %1575 = vmatpush1.msra.mxu0 0.0
        %1576 = vmatprep.subr.mxu0 0.0
        %1577 = vmatpush1.msra.mxu0 0.0
        %1578 = vmatprep.subr.mxu0 0.0
        %1579 = vmatpush1.msra.mxu0 0.0
        %1580 = vmatprep.subr.mxu0 0.0
        %1581 = vmatpush1.msra.mxu0 0.0
        %1582 = vmatprep.subr.mxu0 0.0
        %1583 = vmatpush1.msra.mxu0 0.0
        %1584 = vmatprep.subr.mxu0 0.0
        %1585 = vmatpush1.msra.mxu0 0.0
        %1586 = vmatprep.subr.mxu0 0.0
        %1587 = vmatpush1.msra.mxu0 0.0
        %1588 = vmatprep.subr.mxu0 0.0
        %1589 = vmatpush1.msra.mxu0 0.0
        %1590 = vmatprep.subr.mxu0 0.0
        %1591 = vmatpush1.msra.mxu0 %v1538
        %1592 = vmatprep.subr.mxu0 0.0
        %1593 = vmatpush2.msra.mxu0 0.0
        %1594 = vmatprep.subr.mxu0 0.0
        %1595 = vmatpush2.msra.mxu0 0.0
        %1596 = vmatprep.subr.mxu0 0.0
        %1597 = vmatpush2.msra.mxu0 0.0
        %1598 = vmatprep.subr.mxu0 0.0
        %1599 = vmatpush2.msra.mxu0 0.0
        %1600 = vmatprep.subr.mxu0 0.0
        %1601 = vmatpush2.msra.mxu0 0.0
        %1602 = vmatprep.subr.mxu0 0.0
        %1603 = vmatpush2.msra.mxu0 0.0
        %1604 = vmatprep.subr.mxu0 0.0
        %1605 = vmatpush2.msra.mxu0 0.0
        %1606 = vmatprep.subr.mxu0 0.0
        %1607 = vmatpush2.msra.mxu0 0.0
        %1608 = vmatprep.subr.mxu0 0.0
        %1609 = vmatpush2.msra.mxu0 0.0
        %1610 = vmatprep.subr.mxu0 0.0
        %1611 = vmatpush2.msra.mxu0 0.0
        %1612 = vmatprep.subr.mxu0 0.0
        %1613 = vmatpush2.msra.mxu0 0.0
        %1614 = vmatprep.subr.mxu0 0.0
        %1615 = vmatpush2.msra.mxu0 0.0
        %1616 = vmatprep.subr.mxu0 0.0
        %1617 = vmatpush2.msra.mxu0 0.0
        %1618 = vmatprep.subr.mxu0 0.0
        %1619 = vmatpush2.msra.mxu0 0.0
        %1620 = vmatprep.subr.mxu0 0.0
        %1621 = vmatpush2.msra.mxu0 0.0
        %1622 = vmatprep.subr.mxu0 0.0
        %1623 = vmatpush2.msra.mxu0 0.0
        %1624 = vmatprep.mubr.f32.mxu0 0.0
        %1625 = vmatmul.mubr.f32.gmra.mxu0 %v1556
        %v1626 = vpop.f32.mrf.mxu0
        %v1627 = vadd.f32 0.0, %v1626
        %v1628 = vpop.f32.mrf.mxu0
        %1629 = vmatprep.mubr.f32.mxu0 0.0
        %1630 = vmatmul.mubr.f32.gmra.mxu0 %v1558
        %v1631 = vpop.f32.mrf.mxu0
        %v1632 = vadd.f32 0.0, %v1631
        %v1633 = vpop.f32.mrf.mxu0
        %1634 = vdwg.mxu0
        %v1635 = vsel %vm993, %v1547, 0
        %v1637 = vsel %vm993, %v1544, 0
        %1639 = vmatprep.subr.mxu0 0.0
        %1640 = vmatpush1.msra.mxu0 0.0
        %1641 = vmatprep.subr.mxu0 0.0
        %1642 = vmatpush1.msra.mxu0 0.0
        %1643 = vmatprep.subr.mxu0 0.0
        %1644 = vmatpush1.msra.mxu0 0.0
        %1645 = vmatprep.subr.mxu0 0.0
        %1646 = vmatpush1.msra.mxu0 0.0
        %1647 = vmatprep.subr.mxu0 0.0
        %1648 = vmatpush1.msra.mxu0 0.0
        %1649 = vmatprep.subr.mxu0 0.0
        %1650 = vmatpush1.msra.mxu0 0.0
        %1651 = vmatprep.subr.mxu0 0.0
        %1652 = vmatpush1.msra.mxu0 0.0
        %1653 = vmatprep.subr.mxu0 0.0
        %1654 = vmatpush1.msra.mxu0 0.0
        %1655 = vmatprep.subr.mxu0 0.0
        %1656 = vmatpush1.msra.mxu0 0.0
        %1657 = vmatprep.subr.mxu0 0.0
        %1658 = vmatpush1.msra.mxu0 0.0
        %1659 = vmatprep.subr.mxu0 0.0
        %1660 = vmatpush1.msra.mxu0 0.0
        %1661 = vmatprep.subr.mxu0 0.0
        %1662 = vmatpush1.msra.mxu0 0.0
        %1663 = vmatprep.subr.mxu0 0.0
        %1664 = vmatpush1.msra.mxu0 0.0
        %1665 = vmatprep.subr.mxu0 0.0
        %1666 = vmatpush1.msra.mxu0 0.0
        %1667 = vmatprep.subr.mxu0 0.0
        %1668 = vmatpush1.msra.mxu0 0.0
        %1669 = vmatprep.subr.mxu0 0.0
        %1670 = vmatpush1.msra.mxu0 %v1537
        %1671 = vmatprep.subr.mxu0 0.0
        %1672 = vmatpush2.msra.mxu0 0.0
        %1673 = vmatprep.subr.mxu0 0.0
        %1674 = vmatpush2.msra.mxu0 0.0
        %1675 = vmatprep.subr.mxu0 0.0
        %1676 = vmatpush2.msra.mxu0 0.0
        %1677 = vmatprep.subr.mxu0 0.0
        %1678 = vmatpush2.msra.mxu0 0.0
        %1679 = vmatprep.subr.mxu0 0.0
        %1680 = vmatpush2.msra.mxu0 0.0
        %1681 = vmatprep.subr.mxu0 0.0
        %1682 = vmatpush2.msra.mxu0 0.0
        %1683 = vmatprep.subr.mxu0 0.0
        %1684 = vmatpush2.msra.mxu0 0.0
        %1685 = vmatprep.subr.mxu0 0.0
        %1686 = vmatpush2.msra.mxu0 0.0
        %1687 = vmatprep.subr.mxu0 0.0
        %1688 = vmatpush2.msra.mxu0 0.0
        %1689 = vmatprep.subr.mxu0 0.0
        %1690 = vmatpush2.msra.mxu0 0.0
        %1691 = vmatprep.subr.mxu0 0.0
        %1692 = vmatpush2.msra.mxu0 0.0
        %1693 = vmatprep.subr.mxu0 0.0
        %1694 = vmatpush2.msra.mxu0 0.0
        %1695 = vmatprep.subr.mxu0 0.0
        %1696 = vmatpush2.msra.mxu0 0.0
        %1697 = vmatprep.subr.mxu0 0.0
        %1698 = vmatpush2.msra.mxu0 0.0
        %1699 = vmatprep.subr.mxu0 0.0
        %1700 = vmatpush2.msra.mxu0 0.0
        %1701 = vmatprep.subr.mxu0 0.0
        %1702 = vmatpush2.msra.mxu0 0.0
        %1703 = vmatprep.mubr.f32.mxu0 0.0
        %1704 = vmatmul.mubr.f32.gmra.mxu0 %v1635
        %v1705 = vpop.f32.mrf.mxu0
        %v1706 = vadd.f32 %v1627, %v1705
        %v1707 = vpop.f32.mrf.mxu0
        %1708 = vmatprep.mubr.f32.mxu0 0.0
        %1709 = vmatmul.mubr.f32.gmra.mxu0 %v1637
        %v1710 = vpop.f32.mrf.mxu0
        %v1711 = vadd.f32 %v1632, %v1710
        %v1712 = vpop.f32.mrf.mxu0
        %1713 = vdwg.mxu0
        %v1714 = vrot.slane %v1547, 2
        %v1715 = vrot.slane %v1544, 2
        %v1716 = vsel %vm652, %v1714, %v1715
        %v1717 = vrot.slane %v1548, 2
        %v1718 = vsel %vm652, %v1715, %v1717
        %v1719 = vsel %vm993, %v1716, 0
        %v1721 = vsel %vm993, %v1718, 0
        %1723 = vmatprep.subr.mxu0 0.0
        %1724 = vmatpush1.msra.mxu0 0.0
        %1725 = vmatprep.subr.mxu0 0.0
        %1726 = vmatpush1.msra.mxu0 0.0
        %1727 = vmatprep.subr.mxu0 0.0
        %1728 = vmatpush1.msra.mxu0 0.0
        %1729 = vmatprep.subr.mxu0 0.0
        %1730 = vmatpush1.msra.mxu0 0.0
        %1731 = vmatprep.subr.mxu0 0.0
        %1732 = vmatpush1.msra.mxu0 0.0
        %1733 = vmatprep.subr.mxu0 0.0
        %1734 = vmatpush1.msra.mxu0 0.0
        %1735 = vmatprep.subr.mxu0 0.0
        %1736 = vmatpush1.msra.mxu0 0.0
        %1737 = vmatprep.subr.mxu0 0.0
        %1738 = vmatpush1.msra.mxu0 0.0
        %1739 = vmatprep.subr.mxu0 0.0
        %1740 = vmatpush1.msra.mxu0 0.0
        %1741 = vmatprep.subr.mxu0 0.0
        %1742 = vmatpush1.msra.mxu0 0.0
        %1743 = vmatprep.subr.mxu0 0.0
        %1744 = vmatpush1.msra.mxu0 0.0
        %1745 = vmatprep.subr.mxu0 0.0
        %1746 = vmatpush1.msra.mxu0 0.0
        %1747 = vmatprep.subr.mxu0 0.0
        %1748 = vmatpush1.msra.mxu0 0.0
        %1749 = vmatprep.subr.mxu0 0.0
        %1750 = vmatpush1.msra.mxu0 0.0
        %1751 = vmatprep.subr.mxu0 0.0
        %1752 = vmatpush1.msra.mxu0 0.0
        %1753 = vmatprep.subr.mxu0 0.0
        %1754 = vmatpush1.msra.mxu0 %v1539
        %1755 = vmatprep.subr.mxu0 0.0
        %1756 = vmatpush2.msra.mxu0 0.0
        %1757 = vmatprep.subr.mxu0 0.0
        %1758 = vmatpush2.msra.mxu0 0.0
        %1759 = vmatprep.subr.mxu0 0.0
        %1760 = vmatpush2.msra.mxu0 0.0
        %1761 = vmatprep.subr.mxu0 0.0
        %1762 = vmatpush2.msra.mxu0 0.0
        %1763 = vmatprep.subr.mxu0 0.0
        %1764 = vmatpush2.msra.mxu0 0.0
        %1765 = vmatprep.subr.mxu0 0.0
        %1766 = vmatpush2.msra.mxu0 0.0
        %1767 = vmatprep.subr.mxu0 0.0
        %1768 = vmatpush2.msra.mxu0 0.0
        %1769 = vmatprep.subr.mxu0 0.0
        %1770 = vmatpush2.msra.mxu0 0.0
        %1771 = vmatprep.subr.mxu0 0.0
        %1772 = vmatpush2.msra.mxu0 0.0
        %1773 = vmatprep.subr.mxu0 0.0
        %1774 = vmatpush2.msra.mxu0 0.0
        %1775 = vmatprep.subr.mxu0 0.0
        %1776 = vmatpush2.msra.mxu0 0.0
        %1777 = vmatprep.subr.mxu0 0.0
        %1778 = vmatpush2.msra.mxu0 0.0
        %1779 = vmatprep.subr.mxu0 0.0
        %1780 = vmatpush2.msra.mxu0 0.0
        %1781 = vmatprep.subr.mxu0 0.0
        %1782 = vmatpush2.msra.mxu0 0.0
        %1783 = vmatprep.subr.mxu0 0.0
        %1784 = vmatpush2.msra.mxu0 0.0
        %1785 = vmatprep.subr.mxu0 0.0
        %1786 = vmatpush2.msra.mxu0 0.0
        %1787 = vmatprep.mubr.f32.mxu0 0.0
        %1788 = vmatmul.mubr.f32.gmra.mxu0 %v1719
        %v1789 = vpop.f32.mrf.mxu0
        %v1790 = vadd.f32 0.0, %v1789
        %v1791 = vpop.f32.mrf.mxu0
        %1792 = vmatprep.mubr.f32.mxu0 0.0
        %1793 = vmatmul.mubr.f32.gmra.mxu0 %v1721
        %v1794 = vpop.f32.mrf.mxu0
        %v1795 = vadd.f32 0.0, %v1794
        %v1796 = vpop.f32.mrf.mxu0
        %1797 = vdwg.mxu0
        %v1798 = vadd.f32 %v1706, %v1790
        %v1799 = vadd.f32 %v1711, %v1795
        %v1800 = vld [vmem:[%s13] sm:$0x1]
        %v1802 = vlaneseq
        %v1803 = vshrl.u32 %v1802, 7
        %v1804 = vsub.s32 0, %v1803
        %v1805 = vrot.slane %v1800, %v1804
        %v1807 = vadd.f32 %v1798, %v1805
        %v1808 = vadd.f32 %v1799, %v1805
        %v1809 = vsel %vm609, %v1400, 0
        %1811 = vmatprep.subr.mxu0 0.0
        %1812 = vmatpush1.msra.mxu0 0.0
        %1813 = vmatprep.subr.mxu0 0.0
        %1814 = vmatpush1.msra.mxu0 0.0
        %1815 = vmatprep.subr.mxu0 0.0
        %1816 = vmatpush1.msra.mxu0 0.0
        %1817 = vmatprep.subr.mxu0 0.0
        %1818 = vmatpush1.msra.mxu0 0.0
        %1819 = vmatprep.subr.mxu0 0.0
        %1820 = vmatpush1.msra.mxu0 0.0
        %1821 = vmatprep.subr.mxu0 0.0
        %1822 = vmatpush1.msra.mxu0 0.0
        %1823 = vmatprep.subr.mxu0 0.0
        %1824 = vmatpush1.msra.mxu0 0.0
        %1825 = vmatprep.subr.mxu0 0.0
        %1826 = vmatpush1.msra.mxu0 0.0
        %1827 = vmatprep.subr.mxu0 0.0
        %1828 = vmatpush1.msra.mxu0 0.0
        %1829 = vmatprep.subr.mxu0 0.0
        %1830 = vmatpush1.msra.mxu0 0.0
        %1831 = vmatprep.subr.mxu0 0.0
        %1832 = vmatpush1.msra.mxu0 0.0
        %1833 = vmatprep.subr.mxu0 0.0
        %1834 = vmatpush1.msra.mxu0 0.0
        %1835 = vmatprep.subr.mxu0 0.0
        %1836 = vmatpush1.msra.mxu0 0.0
        %1837 = vmatprep.subr.mxu0 0.0
        %1838 = vmatpush1.msra.mxu0 0.0
        %1839 = vmatprep.subr.mxu0 0.0
        %1840 = vmatpush1.msra.mxu0 %v1808
        %1841 = vmatprep.subr.mxu0 0.0
        %1842 = vmatpush1.msra.mxu0 %v1807
        %1843 = vmatprep.subr.mxu0 0.0
        %1844 = vmatpush2.msra.mxu0 0.0
        %1845 = vmatprep.subr.mxu0 0.0
        %1846 = vmatpush2.msra.mxu0 0.0
        %1847 = vmatprep.subr.mxu0 0.0
        %1848 = vmatpush2.msra.mxu0 0.0
        %1849 = vmatprep.subr.mxu0 0.0
        %1850 = vmatpush2.msra.mxu0 0.0
        %1851 = vmatprep.subr.mxu0 0.0
        %1852 = vmatpush2.msra.mxu0 0.0
        %1853 = vmatprep.subr.mxu0 0.0
        %1854 = vmatpush2.msra.mxu0 0.0
        %1855 = vmatprep.subr.mxu0 0.0
        %1856 = vmatpush2.msra.mxu0 0.0
        %1857 = vmatprep.subr.mxu0 0.0
        %1858 = vmatpush2.msra.mxu0 0.0
        %1859 = vmatprep.subr.mxu0 0.0
        %1860 = vmatpush2.msra.mxu0 0.0
        %1861 = vmatprep.subr.mxu0 0.0
        %1862 = vmatpush2.msra.mxu0 0.0
        %1863 = vmatprep.subr.mxu0 0.0
        %1864 = vmatpush2.msra.mxu0 0.0
        %1865 = vmatprep.subr.mxu0 0.0
        %1866 = vmatpush2.msra.mxu0 0.0
        %1867 = vmatprep.subr.mxu0 0.0
        %1868 = vmatpush2.msra.mxu0 0.0
        %1869 = vmatprep.subr.mxu0 0.0
        %1870 = vmatpush2.msra.mxu0 0.0
        %1871 = vmatprep.subr.mxu0 0.0
        %1872 = vmatpush2.msra.mxu0 0.0
        %1873 = vmatprep.subr.mxu0 0.0
        %1874 = vmatpush2.msra.mxu0 0.0
        %1875 = vmatprep.mubr.f32.mxu0 0.0
        %1876 = vmatmul.mubr.f32.gmra.mxu0 %v1809
        %v1877 = vpop.f32.mrf.mxu0
        %v1878 = vadd.f32 0.0, %v1877
        %v1879 = vpop.f32.mrf.mxu0
        %1880 = vdwg.mxu0
        %vm1881 = vcmp.ge.f32.partialorder %v1878, 0.0
        %v1882 = vmul.f32 %v1878, 0.3
        %v1883 = vsel %vm1881, %v1878, %v1882
        %v1884 = vsel %vm609, %v1883, 0.0
        %v1885 = vrot.slane %v1884, 4
        %v1886 = vadd.f32 %v1884, %v1885
        %v1887 = vrot.slane %v1886, 2
        %v1888 = vadd.f32 %v1886, %v1887
        %v1889 = vrot.slane %v1888, 1
        %v1890 = vadd.f32 %v1888, %v1889
        %v1891 = vrcp.pop 8.0
        %v1892 = vmul.f32 %v1890, %v1891
        %v1893 = vsub.f32 %v1883, %v1892
        %v1894 = vmul.f32 %v1893, %v1893
        %v1895 = vsel %vm609, %v1894, 0.0
        %v1896 = vrot.slane %v1895, 4
        %v1897 = vadd.f32 %v1895, %v1896
        %v1898 = vrot.slane %v1897, 2
        %v1899 = vadd.f32 %v1897, %v1898
        %v1900 = vrot.slane %v1899, 1
        %v1901 = vadd.f32 %v1899, %v1900
        %v1902 = vmul.f32 %v1901, %v1891
        %v1903 = vadd.f32 %v1902, 1e-05
        %v1904 = vrsqrt.pop %v1903
        %v1905 = vmul.f32 %v1893, %v1904
        %v1906 = vld [vmem:[%s14] sm:$0x1]
        %v1908 = vlaneseq
        %v1909 = vshrl.u32 %v1908, 7
        %v1910 = vsub.s32 0, %v1909
        %v1911 = vrot.slane %v1906, %v1910
        %v1913 = vmul.f32 %v1905, %v1911
        %v1914 = vld [vmem:[%s15] sm:$0x1]
        %v1916 = vlaneseq
        %v1917 = vshrl.u32 %v1916, 7
        %v1918 = vsub.s32 0, %v1917
        %v1919 = vrot.slane %v1914, %v1918
        %v1921 = vadd.f32 %v1913, %v1919
        %v1922 = vld [vmem:[%s556] sm:$0xff]
        %1924 = vset.pattern.permute.xlu0 0
        %1925 = vperm.xlu0 %1924, %v1922
        %v1926 = vpop.permute.xlu0 %1925
        %v1928 = vmul.f32 %v1921, %v1926
        %1929 = vst.msk [vmem:[%s542] sm:$0xff] %vm609, %v1928
        %s1930 = sand.u32 %s389, 1
        %s1931 = scalar_lea.sflag [#allocation3], %s1930
        %s1932 = sand.u32 %s389, 1
        %s1933 = smul.addr %s1932, 8
        %s1934 = scalar_lea.vmem [#allocation2], %s1933
        // Predicated region
        $region85: #{tpu_custom_call.1} parent=83 // pred_check
          %p1935 = pneg %p399
        $region86: #{tpu_custom_call.1} parent=83 // pred_check_branch
          %1937 = sbr.rel (%p1935) target = $region88
        $region87: #{tpu_custom_call.1} parent=83 // pred_region
          %s1939 = ssub.s32 128, 128
          %1940 = vsyncadd %s1931, %s1939
          %s1941 = smul.addr %s30, 128
          %s1942 = scalar_lea.hbm %s16, %s1941
          %s1944 = sshll.u32 %s1934, 4
          %s1945 = int_to_ptr.vmem [resolvable:$true] %s1944
          %1947 = dma.vmem_to_hbm [thread:$0]  %s1945, 128, %s1942, %s1931
        $region88: #{tpu_custom_call.1} parent=83 // pred_fallthru
          _
      $region84: #{tpu_custom_call.1} parent=5 // pred_fallthru
        _
      %p1948 = scmp.le.s32.totalorder 2, %s25
      // Predicated region
      $region89: #{tpu_custom_call.1} parent=5 // pred_check
        %p1949 = pneg %p1948
      $region90: #{tpu_custom_call.1} parent=5 // pred_check_branch
        %1951 = sbr.rel (%p1949) target = $region92
      $region91: #{tpu_custom_call.1} parent=5 // pred_region
        %s1952 = ssub.s32 %s25, 2
        // Predicated region
        $region93: #{tpu_custom_call.1} parent=91 // pred_check
          %p1953 = pneg %p405
        $region94: #{tpu_custom_call.1} parent=91 // pred_check_branch
          %1955 = sbr.rel (%p1953) target = $region96
        $region95: #{tpu_custom_call.1} parent=91 // pred_region
          %s1956 = sand.u32 %s390, 1
          %s1957 = scalar_lea.sflag [#allocation3], %s1956
          %s1958 = sand.u32 %s390, 1
          %s1959 = smul.addr %s1958, 8
          %s1960 = scalar_lea.vmem [#allocation2], %s1959
          %1961 = dma.done %s1957, 128
        $region96: #{tpu_custom_call.1} parent=91 // pred_fallthru
          _
      $region92: #{tpu_custom_call.1} parent=5 // pred_fallthru
        _
    $region6: #{tpu_custom_call.1} parent=1 // loop_footer
      %s29 = sadd.s32 1, %s25
    $region7: #{tpu_custom_call.1} parent=1 // loop_footer_branch
      %24 = sbr.rel target = $region3
    $region8: #{tpu_custom_call.1} parent=1 // loop_exit
      _
    %1962 = vsyncpa [#allocation3], 1
    %s1963 = scalar_lea.sflag [#allocation3], 1
    %1964 = vsyncpa %s1963, 1

</llo_original>
